<compile_context>
chip_gen: v6e
topology: v6e:2x2x1
jax: 0.10.0
libtpu: 0.0.40
codegen_flags: <defaults>
</compile_context>

<pallas_src>
import functools

import jax
import jax.numpy as jnp
from jax import lax
from jax.experimental import pallas as pl
from jax.experimental.pallas import tpu as pltpu

D_IN = 768
D_HID = 384
TM_MAX = 1024  # rows per tile; bounded VMEM footprint on all generations


def adapter_kernel(x_ref, w1_ref, w2_ref, o_ref, *, compute_dtype):
    # x_ref : (TM, 768)   w1_ref : (768, 384)   w2_ref : (384, 768)
    # Cast folded into the kernel (cheap VPU op on the VMEM-resident tile).
    x = x_ref[...].astype(compute_dtype)
    # Linear(768 -> 384) + ReLU  (MXU matmul, f32 accumulation)
    h = jnp.dot(x, w1_ref[...], preferred_element_type=jnp.float32)
    h = jnp.maximum(h, 0.0)
    # Linear(384 -> 768) + ReLU; intermediate never leaves VMEM/vregs.
    y = jnp.dot(h.astype(w2_ref.dtype), w2_ref[...],
                preferred_element_type=jnp.float32)
    y = jnp.maximum(y, 0.0)
    o_ref[...] = y.astype(o_ref.dtype)


def _pick_tm(m, tm_max):
    """Row-tile selection.

    * Small M: one full-extent block (always a legal block shape).
    * Large M: 256-row MXU cadence (v6e/v7x pass width), capped at tm_max,
      and small enough that the grid has >= 2 blocks (megacore / 2-TC work).
    """
    if m <= min(512, tm_max):
        return m
    tm = min(tm_max, max(256, (pl.cdiv(m, 2) // 256) * 256))
    return max(8, (tm // 8) * 8)  # sublane alignment for non-full blocks


def adapter_forward(x, w1_t, w2_t, *, compute_dtype=jnp.bfloat16,
                    out_dtype=None, tm_max=TM_MAX):
    """x: (..., 768); w1_t: (768, 384); w2_t: (384, 768).

    compute_dtype: dtype the matmuls run in (bf16 default; accumulation f32).
    out_dtype: output dtype (default: x.dtype; pass bf16 on v6e to halve the
    HBM write stream when downstream consumers allow it).
    """
    orig_shape = x.shape
    out_dtype = x.dtype if out_dtype is None else jnp.dtype(out_dtype)

    m = 1
    for s in orig_shape[:-1]:
        m *= s
    x2d = x.reshape(m, D_IN)           # no pad, no cast — kernel handles both

    tm = _pick_tm(m, tm_max)
    grid = (pl.cdiv(m, tm),)

    # Weights are tiny (0.56 MiB each in bf16); cast once in the wrapper so
    # they sit in VMEM in the MXU-native dtype for the whole grid.
    w1_c = w1_t.astype(compute_dtype)
    w2_c = w2_t.astype(compute_dtype)

    in_bytes = m * D_IN * jnp.dtype(x.dtype).itemsize
    out_bytes = m * D_IN * jnp.dtype(out_dtype).itemsize
    w_bytes = 2 * D_IN * D_HID * jnp.dtype(compute_dtype).itemsize
    cost = pl.CostEstimate(
        flops=4 * m * D_IN * D_HID,      # two matmuls, 2*M*K*N each
        transcendentals=0,
        bytes_accessed=in_bytes + out_bytes + w_bytes,
    )

    out = pl.pallas_call(
        functools.partial(adapter_kernel, compute_dtype=compute_dtype),
        out_shape=jax.ShapeDtypeStruct((m, D_IN), out_dtype),
        grid=grid,
        in_specs=[
            pl.BlockSpec((tm, D_IN), lambda i: (i, 0)),       # x tile
            pl.BlockSpec((D_IN, D_HID), lambda i: (0, 0)),    # W1 (resident)
            pl.BlockSpec((D_HID, D_IN), lambda i: (0, 0)),    # W2 (resident)
        ],
        out_specs=pl.BlockSpec((tm, D_IN), lambda i: (i, 0)),
        compiler_params=pltpu.CompilerParams(
            dimension_semantics=("parallel",),   # shard M across TCs
            vmem_limit_bytes=48 * 1024 * 1024,   # headroom on v5e default 16MiB
        ),
        cost_estimate=cost,
    )(x2d, w1_c, w2_c)

    return out.reshape(orig_shape[:-1] + (D_IN,))


def init_params(key):
    # Deterministic synthetic init mimicking nn.Linear's kaiming-uniform scale.
    k1, k2 = jax.random.split(key)
    bound1 = 1.0 / (D_IN ** 0.5)
    bound2 = 1.0 / (D_HID ** 0.5)
    # PyTorch weight layouts are (out, in); store transposed for the kernel.
    w1 = jax.random.uniform(k1, (D_HID, D_IN), jnp.float32, -bound1, bound1)
    w2 = jax.random.uniform(k2, (D_IN, D_HID), jnp.float32, -bound2, bound2)
    return w1.T, w2.T  # (768, 384), (384, 768)


def _ref(x, w1_t, w2_t):
    # High-precision plain-JAX reference.
    h = jnp.maximum(jnp.dot(x, w1_t, precision=lax.Precision.HIGHEST), 0.0)
    return jnp.maximum(jnp.dot(h, w2_t, precision=lax.Precision.HIGHEST), 0.0)


if __name__ == "__main__":
    key = jax.random.PRNGKey(0)
    kx, kp, k3 = jax.random.split(key, 3)

    # Small batch/seq; feature dims are fixed by the module (768 / 384).
    batch, seq = 2, 8
    x = jax.random.normal(kx, (batch, seq, D_IN), dtype=jnp.float32)
    w1_t, w2_t = init_params(kp)
    ref = _ref(x, w1_t, w2_t)

    # 1) f32 compute path: tight structural check of the kernel.
    y_f32 = jax.block_until_ready(
        adapter_forward(x, w1_t, w2_t, compute_dtype=jnp.float32))
    assert y_f32.shape == x.shape
    assert jnp.allclose(y_f32, ref, atol=2e-3, rtol=2e-3)

    # 2) Default bf16 compute path (perf configuration): looser tolerance.
    y_bf16 = jax.block_until_ready(adapter_forward(x, w1_t, w2_t))
    assert y_bf16.shape == x.shape
    assert jnp.allclose(y_bf16, ref, atol=6e-2, rtol=6e-2)

    # 3) Multi-block grid with a partial tail block (exercises the pad-free
    #    path): M=300 rows, forced TM=128 -> grid=(3,), last block masked.
    x3 = jax.random.normal(k3, (300, D_IN), dtype=jnp.float32)
    ref3 = _ref(x3, w1_t, w2_t)
    y3 = jax.block_until_ready(
        adapter_forward(x3, w1_t, w2_t, compute_dtype=jnp.float32,
                        tm_max=128))
    assert y3.shape == x3.shape
    assert jnp.allclose(y3, ref3, atol=2e-3, rtol=2e-3)

    print("KERNEL_OK")
</pallas_src>

<mosaic_0001>
module attributes {stable_mosaic.version = 11 : i64} {
  func.func @adapter_kernel(%arg0: i32, %arg1: memref<16x768xf32, #tpu.memory_space<vmem>>, %arg2: memref<768x384xf32, #tpu.memory_space<vmem>>, %arg3: memref<384x768xf32, #tpu.memory_space<vmem>>, %arg4: memref<16x768xf32, #tpu.memory_space<vmem>>) attributes {dimension_semantics = [#tpu.dimension_semantics<parallel>], iteration_bounds = array<i64: 1>, scalar_prefetch = 0 : i64, scratch_operands = 0 : i64, tpu.core_type = #tpu.core_type<tc>, window_params = [{transform_indices = @transform_0, window_bounds = array<i64: 16, 768>}, {pipeline_mode = #tpu.pipeline_mode<synchronous>, transform_indices = @transform_1, window_bounds = array<i64: 768, 384>}, {pipeline_mode = #tpu.pipeline_mode<synchronous>, transform_indices = @transform_2, window_bounds = array<i64: 384, 768>}, {transform_indices = @transform_3, window_bounds = array<i64: 16, 768>}]} {
    %c0 = arith.constant 0 : index
    %c0_0 = arith.constant 0 : index
    %0 = vector.load %arg1[%c0, %c0_0] : memref<16x768xf32, #tpu.memory_space<vmem>>, vector<16x768xf32>
    %c0_1 = arith.constant 0 : index
    %c0_2 = arith.constant 0 : index
    %1 = vector.load %arg2[%c0_1, %c0_2] : memref<768x384xf32, #tpu.memory_space<vmem>>, vector<768x384xf32>
    %cst = arith.constant dense<0.000000e+00> : vector<16x384xf32>
    %2 = tpu.matmul %0, %1, %cst {dimension_numbers = #tpu.dot_dimension_numbers<[1], [0], [0], [1], [0, 0, 1, 1], [], []>} : vector<16x768xf32>, vector<768x384xf32>, vector<16x384xf32> -> vector<16x384xf32>
    %cst_3 = arith.constant 0.000000e+00 : f32
    %3 = vector.broadcast %cst_3 : f32 to vector<16x384xf32>
    %4 = arith.maximumf %2, %3 : vector<16x384xf32>
    %c0_4 = arith.constant 0 : index
    %c0_5 = arith.constant 0 : index
    %5 = vector.load %arg3[%c0_4, %c0_5] : memref<384x768xf32, #tpu.memory_space<vmem>>, vector<384x768xf32>
    %cst_6 = arith.constant dense<0.000000e+00> : vector<16x768xf32>
    %6 = tpu.matmul %4, %5, %cst_6 {dimension_numbers = #tpu.dot_dimension_numbers<[1], [0], [0], [1], [0, 0, 1, 1], [], []>} : vector<16x384xf32>, vector<384x768xf32>, vector<16x768xf32> -> vector<16x768xf32>
    %cst_7 = arith.constant 0.000000e+00 : f32
    %7 = vector.broadcast %cst_7 : f32 to vector<16x768xf32>
    %8 = arith.maximumf %6, %7 : vector<16x768xf32>
    %c0_8 = arith.constant 0 : index
    %c0_9 = arith.constant 0 : index
    %9 = vector.load %arg4[%c0_8, %c0_9] : memref<16x768xf32, #tpu.memory_space<vmem>>, vector<16x768xf32>
    tpu.vector_store %arg4[%c0_8, %c0_9], %8 {strides = array<i32>} : memref<16x768xf32, #tpu.memory_space<vmem>>, vector<16x768xf32>,
    return
  }
  func.func @transform_0(%arg0: i32) -> (i32, i32) {
    %c0_i32 = arith.constant 0 : i32
    %c0_i32_0 = arith.constant 0 : i32
    return %arg0, %c0_i32 : i32, i32
  }
  func.func @transform_1(%arg0: i32) -> (i32, i32) {
    %c0_i32 = arith.constant 0 : i32
    %c0_i32_0 = arith.constant 0 : i32
    %c0_i32_1 = arith.constant 0 : i32
    return %c0_i32, %c0_i32_0 : i32, i32
  }
  func.func @transform_2(%arg0: i32) -> (i32, i32) {
    %c0_i32 = arith.constant 0 : i32
    %c0_i32_0 = arith.constant 0 : i32
    %c0_i32_1 = arith.constant 0 : i32
    return %c0_i32, %c0_i32_0 : i32, i32
  }
  func.func @transform_3(%arg0: i32) -> (i32, i32) {
    %c0_i32 = arith.constant 0 : i32
    %c0_i32_0 = arith.constant 0 : i32
    return %arg0, %c0_i32 : i32, i32
  }
}

</mosaic_0001>

<llo_original>
// kernel: tpu_custom_call.1
$region0: #{tpu_custom_call.1}
  #allocation0 [shape = 'u32[]', space=smem, size = 0x4, offset = 0x4, fixed_abs, tag = 'smem constant byte address 0x4 - core index']
  #allocation1 [shape = 'u32[144,128]{1,0:T(1,128)}', space=vmem, size = 0x12000, scoped, tag = 'internal scratch']
  %s0 = inlined_call_operand.hbm [shape: f32[16,768], index: 0, kind: input, shape index: {}]
  %s1 = inlined_call_operand.hbm [shape: f32[768,384], index: 1, kind: input, shape index: {}]
  %s2 = inlined_call_operand.hbm [shape: f32[384,768], index: 2, kind: input, shape index: {}]
  %s3 = inlined_call_operand.hbm [shape: f32[16,768], index: 3, kind: output, shape index: {}]
  %s4 = sld [smem:[#allocation0]]
  $region34: #{tpu_custom_call.1} parent=0
    _
  %s6 = ssub.s32 1, %s4
  %s7 = scalar_select 0, %s6, %s4
  $region1: #{tpu_custom_call.1} parent=0
    #allocation2 [shape = 'u8[49152]{0}', space=vmem, size = 0xc000, scoped, tag = 'input window, operand 0, single buffered']
    #allocation3 [shape = 's32[1]{0}', space=sflag, size = 0x4, scoped, tag = 'scoped memory for tpu_custom_call.1']
    #allocation4 [shape = 's32[1]{0}', space=sflag, size = 0x4, scoped, tag = 'scoped memory for tpu_custom_call.1']
    #allocation5 [shape = 'u8[1179648]{0}', space=vmem, size = 0x120000, scoped, tag = 'input window, operand 1, single buffered']
    #allocation6 [shape = 's32[1]{0}', space=sflag, size = 0x4, scoped, tag = 'scoped memory for tpu_custom_call.1']
    #allocation7 [shape = 'u8[1179648]{0}', space=vmem, size = 0x120000, scoped, tag = 'input window, operand 2, single buffered']
    #allocation8 [shape = 'u8[49152]{0}', space=vmem, size = 0xc000, scoped, tag = 'output window, operand 0, single buffered']
    %8 = vsyncpa [#allocation3], 0
    %9 = vsyncpa [#allocation6], 0
    %10 = vsyncpa [#allocation4], 0
    // Predicated region
    $region2: #{tpu_custom_call.1} parent=1 // pred_check
      _
    $region3: #{tpu_custom_call.1} parent=1 // pred_check_branch
      %12 = sbr.rel (0) target = $region5
    $region4: #{tpu_custom_call.1} parent=1 // pred_region
      %s14 = ssub.s32 1536, 1536
      %15 = vsyncadd [#allocation3], %s14
      %s16 = sshll.u32 [#allocation2], 4
      %s17 = int_to_ptr.vmem [resolvable:$true] %s16
      %22 = dma.hbm_to_vmem [thread:$0]  %s0, 1536, %s17, [#allocation3], 768, 768, 48
    $region5: #{tpu_custom_call.1} parent=1 // pred_fallthru
      _
    // Predicated region
    $region6: #{tpu_custom_call.1} parent=1 // pred_check
      _
    $region7: #{tpu_custom_call.1} parent=1 // pred_check_branch
      %24 = sbr.rel (0) target = $region9
    $region8: #{tpu_custom_call.1} parent=1 // pred_region
      %s26 = ssub.s32 36864, 36864
      %27 = vsyncadd [#allocation6], %s26
      %s28 = sshll.u32 [#allocation5], 4
      %s29 = int_to_ptr.vmem [resolvable:$true] %s28
      %34 = dma.hbm_to_vmem [thread:$0]  %s1, 36864, %s29, [#allocation6], 384, 384, 24
    $region9: #{tpu_custom_call.1} parent=1 // pred_fallthru
      _
    // Predicated region
    $region10: #{tpu_custom_call.1} parent=1 // pred_check
      _
    $region11: #{tpu_custom_call.1} parent=1 // pred_check_branch
      %36 = sbr.rel (0) target = $region13
    $region12: #{tpu_custom_call.1} parent=1 // pred_region
      %s38 = ssub.s32 36864, 36864
      %39 = vsyncadd [#allocation6], %s38
      %s40 = sshll.u32 [#allocation7], 4
      %s41 = int_to_ptr.vmem [resolvable:$true] %s40
      %46 = dma.hbm_to_vmem [thread:$0]  %s2, 36864, %s41, [#allocation6], 768, 768, 48
    $region13: #{tpu_custom_call.1} parent=1 // pred_fallthru
      _
    // Predicated region
    $region14: #{tpu_custom_call.1} parent=1 // pred_check
      _
    $region15: #{tpu_custom_call.1} parent=1 // pred_check_branch
      %48 = sbr.rel (0) target = $region17
    $region16: #{tpu_custom_call.1} parent=1 // pred_region
      %49 = dma.done [#allocation3], 1536
    $region17: #{tpu_custom_call.1} parent=1 // pred_fallthru
      _
    // Predicated region
    $region18: #{tpu_custom_call.1} parent=1 // pred_check
      _
    $region19: #{tpu_custom_call.1} parent=1 // pred_check_branch
      %51 = sbr.rel (0) target = $region21
    $region20: #{tpu_custom_call.1} parent=1 // pred_region
      %52 = dma.done [#allocation6], 36864
    $region21: #{tpu_custom_call.1} parent=1 // pred_fallthru
      _
    // Predicated region
    $region22: #{tpu_custom_call.1} parent=1 // pred_check
      _
    $region23: #{tpu_custom_call.1} parent=1 // pred_check_branch
      %54 = sbr.rel (0) target = $region25
    $region24: #{tpu_custom_call.1} parent=1 // pred_region
      %55 = dma.done [#allocation6], 36864
    $region25: #{tpu_custom_call.1} parent=1 // pred_fallthru
      _
    %v56 = vld [vmem:[#allocation2] sm:$0xff]
    %v57 = vld [vmem:[#allocation2 + $0x8] sm:$0xff]
    %v58 = vld [vmem:[#allocation2 + $0x10] sm:$0xff]
    %v59 = vld [vmem:[#allocation2 + $0x18] sm:$0xff]
    %v60 = vld [vmem:[#allocation2 + $0x20] sm:$0xff]
    %v61 = vld [vmem:[#allocation2 + $0x28] sm:$0xff]
    %v62 = vld [vmem:[#allocation2 + $0x30] sm:$0xff]
    %v63 = vld [vmem:[#allocation2 + $0x38] sm:$0xff]
    %v64 = vld [vmem:[#allocation2 + $0x40] sm:$0xff]
    %v65 = vld [vmem:[#allocation2 + $0x48] sm:$0xff]
    %v66 = vld [vmem:[#allocation2 + $0x50] sm:$0xff]
    %v67 = vld [vmem:[#allocation2 + $0x58] sm:$0xff]
    %v68 = vld [vmem:[#allocation5] sm:$0xff]
    %v69 = vld [vmem:[#allocation5 + $0x8] sm:$0xff]
    %v70 = vld [vmem:[#allocation5 + $0x10] sm:$0xff]
    %v71 = vld [vmem:[#allocation5 + $0x18] sm:$0xff]
    %v72 = vld [vmem:[#allocation5 + $0x20] sm:$0xff]
    %v73 = vld [vmem:[#allocation5 + $0x28] sm:$0xff]
    %v74 = vld [vmem:[#allocation5 + $0x30] sm:$0xff]
    %v75 = vld [vmem:[#allocation5 + $0x38] sm:$0xff]
    %v76 = vld [vmem:[#allocation5 + $0x40] sm:$0xff]
    %v77 = vld [vmem:[#allocation5 + $0x48] sm:$0xff]
    %v78 = vld [vmem:[#allocation5 + $0x50] sm:$0xff]
    %v79 = vld [vmem:[#allocation5 + $0x58] sm:$0xff]
    %v80 = vld [vmem:[#allocation5 + $0x60] sm:$0xff]
    %v81 = vld [vmem:[#allocation5 + $0x68] sm:$0xff]
    %v82 = vld [vmem:[#allocation5 + $0x70] sm:$0xff]
    %v83 = vld [vmem:[#allocation5 + $0x78] sm:$0xff]
    %v84 = vld [vmem:[#allocation5 + $0x80] sm:$0xff]
    %v85 = vld [vmem:[#allocation5 + $0x88] sm:$0xff]
    %v86 = vld [vmem:[#allocation5 + $0x90] sm:$0xff]
    %v87 = vld [vmem:[#allocation5 + $0x98] sm:$0xff]
    %v88 = vld [vmem:[#allocation5 + $0xa0] sm:$0xff]
    %v89 = vld [vmem:[#allocation5 + $0xa8] sm:$0xff]
    %v90 = vld [vmem:[#allocation5 + $0xb0] sm:$0xff]
    %v91 = vld [vmem:[#allocation5 + $0xb8] sm:$0xff]
    %v92 = vld [vmem:[#allocation5 + $0xc0] sm:$0xff]
    %v93 = vld [vmem:[#allocation5 + $0xc8] sm:$0xff]
    %v94 = vld [vmem:[#allocation5 + $0xd0] sm:$0xff]
    %v95 = vld [vmem:[#allocation5 + $0xd8] sm:$0xff]
    %v96 = vld [vmem:[#allocation5 + $0xe0] sm:$0xff]
    %v97 = vld [vmem:[#allocation5 + $0xe8] sm:$0xff]
    %v98 = vld [vmem:[#allocation5 + $0xf0] sm:$0xff]
    %v99 = vld [vmem:[#allocation5 + $0xf8] sm:$0xff]
    %v100 = vld [vmem:[#allocation5 + $0x100] sm:$0xff]
    %v101 = vld [vmem:[#allocation5 + $0x108] sm:$0xff]
    %v102 = vld [vmem:[#allocation5 + $0x110] sm:$0xff]
    %v103 = vld [vmem:[#allocation5 + $0x118] sm:$0xff]
    %v104 = vld [vmem:[#allocation5 + $0x120] sm:$0xff]
    %v105 = vld [vmem:[#allocation5 + $0x128] sm:$0xff]
    %v106 = vld [vmem:[#allocation5 + $0x130] sm:$0xff]
    %v107 = vld [vmem:[#allocation5 + $0x138] sm:$0xff]
    %v108 = vld [vmem:[#allocation5 + $0x140] sm:$0xff]
    %v109 = vld [vmem:[#allocation5 + $0x148] sm:$0xff]
    %v110 = vld [vmem:[#allocation5 + $0x150] sm:$0xff]
    %v111 = vld [vmem:[#allocation5 + $0x158] sm:$0xff]
    %v112 = vld [vmem:[#allocation5 + $0x160] sm:$0xff]
    %v113 = vld [vmem:[#allocation5 + $0x168] sm:$0xff]
    %v114 = vld [vmem:[#allocation5 + $0x170] sm:$0xff]
    %v115 = vld [vmem:[#allocation5 + $0x178] sm:$0xff]
    %v116 = vld [vmem:[#allocation5 + $0x180] sm:$0xff]
    %v117 = vld [vmem:[#allocation5 + $0x188] sm:$0xff]
    %v118 = vld [vmem:[#allocation5 + $0x190] sm:$0xff]
    %v119 = vld [vmem:[#allocation5 + $0x198] sm:$0xff]
    %v120 = vld [vmem:[#allocation5 + $0x1a0] sm:$0xff]
    %v121 = vld [vmem:[#allocation5 + $0x1a8] sm:$0xff]
    %v122 = vld [vmem:[#allocation5 + $0x1b0] sm:$0xff]
    %v123 = vld [vmem:[#allocation5 + $0x1b8] sm:$0xff]
    %v124 = vld [vmem:[#allocation5 + $0x1c0] sm:$0xff]
    %v125 = vld [vmem:[#allocation5 + $0x1c8] sm:$0xff]
    %v126 = vld [vmem:[#allocation5 + $0x1d0] sm:$0xff]
    %v127 = vld [vmem:[#allocation5 + $0x1d8] sm:$0xff]
    %v128 = vld [vmem:[#allocation5 + $0x1e0] sm:$0xff]
    %v129 = vld [vmem:[#allocation5 + $0x1e8] sm:$0xff]
    %v130 = vld [vmem:[#allocation5 + $0x1f0] sm:$0xff]
    %v131 = vld [vmem:[#allocation5 + $0x1f8] sm:$0xff]
    %v132 = vld [vmem:[#allocation5 + $0x200] sm:$0xff]
    %v133 = vld [vmem:[#allocation5 + $0x208] sm:$0xff]
    %v134 = vld [vmem:[#allocation5 + $0x210] sm:$0xff]
    %v135 = vld [vmem:[#allocation5 + $0x218] sm:$0xff]
    %v136 = vld [vmem:[#allocation5 + $0x220] sm:$0xff]
    %v137 = vld [vmem:[#allocation5 + $0x228] sm:$0xff]
    %v138 = vld [vmem:[#allocation5 + $0x230] sm:$0xff]
    %v139 = vld [vmem:[#allocation5 + $0x238] sm:$0xff]
    %v140 = vld [vmem:[#allocation5 + $0x240] sm:$0xff]
    %v141 = vld [vmem:[#allocation5 + $0x248] sm:$0xff]
    %v142 = vld [vmem:[#allocation5 + $0x250] sm:$0xff]
    %v143 = vld [vmem:[#allocation5 + $0x258] sm:$0xff]
    %v144 = vld [vmem:[#allocation5 + $0x260] sm:$0xff]
    %v145 = vld [vmem:[#allocation5 + $0x268] sm:$0xff]
    %v146 = vld [vmem:[#allocation5 + $0x270] sm:$0xff]
    %v147 = vld [vmem:[#allocation5 + $0x278] sm:$0xff]
    %v148 = vld [vmem:[#allocation5 + $0x280] sm:$0xff]
    %v149 = vld [vmem:[#allocation5 + $0x288] sm:$0xff]
    %v150 = vld [vmem:[#allocation5 + $0x290] sm:$0xff]
    %v151 = vld [vmem:[#allocation5 + $0x298] sm:$0xff]
    %v152 = vld [vmem:[#allocation5 + $0x2a0] sm:$0xff]
    %v153 = vld [vmem:[#allocation5 + $0x2a8] sm:$0xff]
    %v154 = vld [vmem:[#allocation5 + $0x2b0] sm:$0xff]
    %v155 = vld [vmem:[#allocation5 + $0x2b8] sm:$0xff]
    %v156 = vld [vmem:[#allocation5 + $0x2c0] sm:$0xff]
    %v157 = vld [vmem:[#allocation5 + $0x2c8] sm:$0xff]
    %v158 = vld [vmem:[#allocation5 + $0x2d0] sm:$0xff]
    %v159 = vld [vmem:[#allocation5 + $0x2d8] sm:$0xff]
    %v160 = vld [vmem:[#allocation5 + $0x2e0] sm:$0xff]
    %v161 = vld [vmem:[#allocation5 + $0x2e8] sm:$0xff]
    %v162 = vld [vmem:[#allocation5 + $0x2f0] sm:$0xff]
    %v163 = vld [vmem:[#allocation5 + $0x2f8] sm:$0xff]
    %v164 = vld [vmem:[#allocation5 + $0x300] sm:$0xff]
    %v165 = vld [vmem:[#allocation5 + $0x308] sm:$0xff]
    %v166 = vld [vmem:[#allocation5 + $0x310] sm:$0xff]
    %v167 = vld [vmem:[#allocation5 + $0x318] sm:$0xff]
    %v168 = vld [vmem:[#allocation5 + $0x320] sm:$0xff]
    %v169 = vld [vmem:[#allocation5 + $0x328] sm:$0xff]
    %v170 = vld [vmem:[#allocation5 + $0x330] sm:$0xff]
    %v171 = vld [vmem:[#allocation5 + $0x338] sm:$0xff]
    %v172 = vld [vmem:[#allocation5 + $0x340] sm:$0xff]
    %v173 = vld [vmem:[#allocation5 + $0x348] sm:$0xff]
    %v174 = vld [vmem:[#allocation5 + $0x350] sm:$0xff]
    %v175 = vld [vmem:[#allocation5 + $0x358] sm:$0xff]
    %v176 = vld [vmem:[#allocation5 + $0x360] sm:$0xff]
    %v177 = vld [vmem:[#allocation5 + $0x368] sm:$0xff]
    %v178 = vld [vmem:[#allocation5 + $0x370] sm:$0xff]
    %v179 = vld [vmem:[#allocation5 + $0x378] sm:$0xff]
    %v180 = vld [vmem:[#allocation5 + $0x380] sm:$0xff]
    %v181 = vld [vmem:[#allocation5 + $0x388] sm:$0xff]
    %v182 = vld [vmem:[#allocation5 + $0x390] sm:$0xff]
    %v183 = vld [vmem:[#allocation5 + $0x398] sm:$0xff]
    %v184 = vld [vmem:[#allocation5 + $0x3a0] sm:$0xff]
    %v185 = vld [vmem:[#allocation5 + $0x3a8] sm:$0xff]
    %v186 = vld [vmem:[#allocation5 + $0x3b0] sm:$0xff]
    %v187 = vld [vmem:[#allocation5 + $0x3b8] sm:$0xff]
    %v188 = vld [vmem:[#allocation5 + $0x3c0] sm:$0xff]
    %v189 = vld [vmem:[#allocation5 + $0x3c8] sm:$0xff]
    %v190 = vld [vmem:[#allocation5 + $0x3d0] sm:$0xff]
    %v191 = vld [vmem:[#allocation5 + $0x3d8] sm:$0xff]
    %v192 = vld [vmem:[#allocation5 + $0x3e0] sm:$0xff]
    %v193 = vld [vmem:[#allocation5 + $0x3e8] sm:$0xff]
    %v194 = vld [vmem:[#allocation5 + $0x3f0] sm:$0xff]
    %v195 = vld [vmem:[#allocation5 + $0x3f8] sm:$0xff]
    %v196 = vld [vmem:[#allocation5 + $0x400] sm:$0xff]
    %v197 = vld [vmem:[#allocation5 + $0x408] sm:$0xff]
    %v198 = vld [vmem:[#allocation5 + $0x410] sm:$0xff]
    %v199 = vld [vmem:[#allocation5 + $0x418] sm:$0xff]
    %v200 = vld [vmem:[#allocation5 + $0x420] sm:$0xff]
    %v201 = vld [vmem:[#allocation5 + $0x428] sm:$0xff]
    %v202 = vld [vmem:[#allocation5 + $0x430] sm:$0xff]
    %v203 = vld [vmem:[#allocation5 + $0x438] sm:$0xff]
    %v204 = vld [vmem:[#allocation5 + $0x440] sm:$0xff]
    %v205 = vld [vmem:[#allocation5 + $0x448] sm:$0xff]
    %v206 = vld [vmem:[#allocation5 + $0x450] sm:$0xff]
    %v207 = vld [vmem:[#allocation5 + $0x458] sm:$0xff]
    %v208 = vld [vmem:[#allocation5 + $0x460] sm:$0xff]
    %v209 = vld [vmem:[#allocation5 + $0x468] sm:$0xff]
    %v210 = vld [vmem:[#allocation5 + $0x470] sm:$0xff]
    %v211 = vld [vmem:[#allocation5 + $0x478] sm:$0xff]
    %v212 = vld [vmem:[#allocation5 + $0x480] sm:$0xff]
    %v213 = vld [vmem:[#allocation5 + $0x488] sm:$0xff]
    %v214 = vld [vmem:[#allocation5 + $0x490] sm:$0xff]
    %v215 = vld [vmem:[#allocation5 + $0x498] sm:$0xff]
    %v216 = vld [vmem:[#allocation5 + $0x4a0] sm:$0xff]
    %v217 = vld [vmem:[#allocation5 + $0x4a8] sm:$0xff]
    %v218 = vld [vmem:[#allocation5 + $0x4b0] sm:$0xff]
    %v219 = vld [vmem:[#allocation5 + $0x4b8] sm:$0xff]
    %v220 = vld [vmem:[#allocation5 + $0x4c0] sm:$0xff]
    %v221 = vld [vmem:[#allocation5 + $0x4c8] sm:$0xff]
    %v222 = vld [vmem:[#allocation5 + $0x4d0] sm:$0xff]
    %v223 = vld [vmem:[#allocation5 + $0x4d8] sm:$0xff]
    %v224 = vld [vmem:[#allocation5 + $0x4e0] sm:$0xff]
    %v225 = vld [vmem:[#allocation5 + $0x4e8] sm:$0xff]
    %v226 = vld [vmem:[#allocation5 + $0x4f0] sm:$0xff]
    %v227 = vld [vmem:[#allocation5 + $0x4f8] sm:$0xff]
    %v228 = vld [vmem:[#allocation5 + $0x500] sm:$0xff]
    %v229 = vld [vmem:[#allocation5 + $0x508] sm:$0xff]
    %v230 = vld [vmem:[#allocation5 + $0x510] sm:$0xff]
    %v231 = vld [vmem:[#allocation5 + $0x518] sm:$0xff]
    %v232 = vld [vmem:[#allocation5 + $0x520] sm:$0xff]
    %v233 = vld [vmem:[#allocation5 + $0x528] sm:$0xff]
    %v234 = vld [vmem:[#allocation5 + $0x530] sm:$0xff]
    %v235 = vld [vmem:[#allocation5 + $0x538] sm:$0xff]
    %v236 = vld [vmem:[#allocation5 + $0x540] sm:$0xff]
    %v237 = vld [vmem:[#allocation5 + $0x548] sm:$0xff]
    %v238 = vld [vmem:[#allocation5 + $0x550] sm:$0xff]
    %v239 = vld [vmem:[#allocation5 + $0x558] sm:$0xff]
    %v240 = vld [vmem:[#allocation5 + $0x560] sm:$0xff]
    %v241 = vld [vmem:[#allocation5 + $0x568] sm:$0xff]
    %v242 = vld [vmem:[#allocation5 + $0x570] sm:$0xff]
    %v243 = vld [vmem:[#allocation5 + $0x578] sm:$0xff]
    %v244 = vld [vmem:[#allocation5 + $0x580] sm:$0xff]
    %v245 = vld [vmem:[#allocation5 + $0x588] sm:$0xff]
    %v246 = vld [vmem:[#allocation5 + $0x590] sm:$0xff]
    %v247 = vld [vmem:[#allocation5 + $0x598] sm:$0xff]
    %v248 = vld [vmem:[#allocation5 + $0x5a0] sm:$0xff]
    %v249 = vld [vmem:[#allocation5 + $0x5a8] sm:$0xff]
    %v250 = vld [vmem:[#allocation5 + $0x5b0] sm:$0xff]
    %v251 = vld [vmem:[#allocation5 + $0x5b8] sm:$0xff]
    %v252 = vld [vmem:[#allocation5 + $0x5c0] sm:$0xff]
    %v253 = vld [vmem:[#allocation5 + $0x5c8] sm:$0xff]
    %v254 = vld [vmem:[#allocation5 + $0x5d0] sm:$0xff]
    %v255 = vld [vmem:[#allocation5 + $0x5d8] sm:$0xff]
    %v256 = vld [vmem:[#allocation5 + $0x5e0] sm:$0xff]
    %v257 = vld [vmem:[#allocation5 + $0x5e8] sm:$0xff]
    %v258 = vld [vmem:[#allocation5 + $0x5f0] sm:$0xff]
    %v259 = vld [vmem:[#allocation5 + $0x5f8] sm:$0xff]
    %v260 = vld [vmem:[#allocation5 + $0x600] sm:$0xff]
    %v261 = vld [vmem:[#allocation5 + $0x608] sm:$0xff]
    %v262 = vld [vmem:[#allocation5 + $0x610] sm:$0xff]
    %v263 = vld [vmem:[#allocation5 + $0x618] sm:$0xff]
    %v264 = vld [vmem:[#allocation5 + $0x620] sm:$0xff]
    %v265 = vld [vmem:[#allocation5 + $0x628] sm:$0xff]
    %v266 = vld [vmem:[#allocation5 + $0x630] sm:$0xff]
    %v267 = vld [vmem:[#allocation5 + $0x638] sm:$0xff]
    %v268 = vld [vmem:[#allocation5 + $0x640] sm:$0xff]
    %v269 = vld [vmem:[#allocation5 + $0x648] sm:$0xff]
    %v270 = vld [vmem:[#allocation5 + $0x650] sm:$0xff]
    %v271 = vld [vmem:[#allocation5 + $0x658] sm:$0xff]
    %v272 = vld [vmem:[#allocation5 + $0x660] sm:$0xff]
    %v273 = vld [vmem:[#allocation5 + $0x668] sm:$0xff]
    %v274 = vld [vmem:[#allocation5 + $0x670] sm:$0xff]
    %v275 = vld [vmem:[#allocation5 + $0x678] sm:$0xff]
    %v276 = vld [vmem:[#allocation5 + $0x680] sm:$0xff]
    %v277 = vld [vmem:[#allocation5 + $0x688] sm:$0xff]
    %v278 = vld [vmem:[#allocation5 + $0x690] sm:$0xff]
    %v279 = vld [vmem:[#allocation5 + $0x698] sm:$0xff]
    %v280 = vld [vmem:[#allocation5 + $0x6a0] sm:$0xff]
    %v281 = vld [vmem:[#allocation5 + $0x6a8] sm:$0xff]
    %v282 = vld [vmem:[#allocation5 + $0x6b0] sm:$0xff]
    %v283 = vld [vmem:[#allocation5 + $0x6b8] sm:$0xff]
    %v284 = vld [vmem:[#allocation5 + $0x6c0] sm:$0xff]
    %v285 = vld [vmem:[#allocation5 + $0x6c8] sm:$0xff]
    %v286 = vld [vmem:[#allocation5 + $0x6d0] sm:$0xff]
    %v287 = vld [vmem:[#allocation5 + $0x6d8] sm:$0xff]
    %v288 = vld [vmem:[#allocation5 + $0x6e0] sm:$0xff]
    %v289 = vld [vmem:[#allocation5 + $0x6e8] sm:$0xff]
    %v290 = vld [vmem:[#allocation5 + $0x6f0] sm:$0xff]
    %v291 = vld [vmem:[#allocation5 + $0x6f8] sm:$0xff]
    %v292 = vld [vmem:[#allocation5 + $0x700] sm:$0xff]
    %v293 = vld [vmem:[#allocation5 + $0x708] sm:$0xff]
    %v294 = vld [vmem:[#allocation5 + $0x710] sm:$0xff]
    %v295 = vld [vmem:[#allocation5 + $0x718] sm:$0xff]
    %v296 = vld [vmem:[#allocation5 + $0x720] sm:$0xff]
    %v297 = vld [vmem:[#allocation5 + $0x728] sm:$0xff]
    %v298 = vld [vmem:[#allocation5 + $0x730] sm:$0xff]
    %v299 = vld [vmem:[#allocation5 + $0x738] sm:$0xff]
    %v300 = vld [vmem:[#allocation5 + $0x740] sm:$0xff]
    %v301 = vld [vmem:[#allocation5 + $0x748] sm:$0xff]
    %v302 = vld [vmem:[#allocation5 + $0x750] sm:$0xff]
    %v303 = vld [vmem:[#allocation5 + $0x758] sm:$0xff]
    %v304 = vld [vmem:[#allocation5 + $0x760] sm:$0xff]
    %v305 = vld [vmem:[#allocation5 + $0x768] sm:$0xff]
    %v306 = vld [vmem:[#allocation5 + $0x770] sm:$0xff]
    %v307 = vld [vmem:[#allocation5 + $0x778] sm:$0xff]
    %v308 = vld [vmem:[#allocation5 + $0x780] sm:$0xff]
    %v309 = vld [vmem:[#allocation5 + $0x788] sm:$0xff]
    %v310 = vld [vmem:[#allocation5 + $0x790] sm:$0xff]
    %v311 = vld [vmem:[#allocation5 + $0x798] sm:$0xff]
    %v312 = vld [vmem:[#allocation5 + $0x7a0] sm:$0xff]
    %v313 = vld [vmem:[#allocation5 + $0x7a8] sm:$0xff]
    %v314 = vld [vmem:[#allocation5 + $0x7b0] sm:$0xff]
    %v315 = vld [vmem:[#allocation5 + $0x7b8] sm:$0xff]
    %v316 = vld [vmem:[#allocation5 + $0x7c0] sm:$0xff]
    %v317 = vld [vmem:[#allocation5 + $0x7c8] sm:$0xff]
    %v318 = vld [vmem:[#allocation5 + $0x7d0] sm:$0xff]
    %v319 = vld [vmem:[#allocation5 + $0x7d8] sm:$0xff]
    %v320 = vld [vmem:[#allocation5 + $0x7e0] sm:$0xff]
    %v321 = vld [vmem:[#allocation5 + $0x7e8] sm:$0xff]
    %v322 = vld [vmem:[#allocation5 + $0x7f0] sm:$0xff]
    %v323 = vld [vmem:[#allocation5 + $0x7f8] sm:$0xff]
    %v324 = vld [vmem:[#allocation5 + $0x800] sm:$0xff]
    %v325 = vld [vmem:[#allocation5 + $0x808] sm:$0xff]
    %v326 = vld [vmem:[#allocation5 + $0x810] sm:$0xff]
    %v327 = vld [vmem:[#allocation5 + $0x818] sm:$0xff]
    %v328 = vld [vmem:[#allocation5 + $0x820] sm:$0xff]
    %v329 = vld [vmem:[#allocation5 + $0x828] sm:$0xff]
    %v330 = vld [vmem:[#allocation5 + $0x830] sm:$0xff]
    %v331 = vld [vmem:[#allocation5 + $0x838] sm:$0xff]
    %v332 = vld [vmem:[#allocation5 + $0x840] sm:$0xff]
    %v333 = vld [vmem:[#allocation5 + $0x848] sm:$0xff]
    %v334 = vld [vmem:[#allocation5 + $0x850] sm:$0xff]
    %v335 = vld [vmem:[#allocation5 + $0x858] sm:$0xff]
    %v336 = vld [vmem:[#allocation5 + $0x860] sm:$0xff]
    %v337 = vld [vmem:[#allocation5 + $0x868] sm:$0xff]
    %v338 = vld [vmem:[#allocation5 + $0x870] sm:$0xff]
    %v339 = vld [vmem:[#allocation5 + $0x878] sm:$0xff]
    %v340 = vld [vmem:[#allocation5 + $0x880] sm:$0xff]
    %v341 = vld [vmem:[#allocation5 + $0x888] sm:$0xff]
    %v342 = vld [vmem:[#allocation5 + $0x890] sm:$0xff]
    %v343 = vld [vmem:[#allocation5 + $0x898] sm:$0xff]
    %v344 = vld [vmem:[#allocation5 + $0x8a0] sm:$0xff]
    %v345 = vld [vmem:[#allocation5 + $0x8a8] sm:$0xff]
    %v346 = vld [vmem:[#allocation5 + $0x8b0] sm:$0xff]
    %v347 = vld [vmem:[#allocation5 + $0x8b8] sm:$0xff]
    %v348 = vld [vmem:[#allocation5 + $0x8c0] sm:$0xff]
    %v349 = vld [vmem:[#allocation5 + $0x8c8] sm:$0xff]
    %v350 = vld [vmem:[#allocation5 + $0x8d0] sm:$0xff]
    %v351 = vld [vmem:[#allocation5 + $0x8d8] sm:$0xff]
    %v352 = vld [vmem:[#allocation5 + $0x8e0] sm:$0xff]
    %v353 = vld [vmem:[#allocation5 + $0x8e8] sm:$0xff]
    %v354 = vld [vmem:[#allocation5 + $0x8f0] sm:$0xff]
    %v355 = vld [vmem:[#allocation5 + $0x8f8] sm:$0xff]
    %356 = vmatprep.subr.mxu0 %v114
    %357 = vmatpush1.msra.mxu0 %v113
    %358 = vmatprep.subr.mxu0 %v111
    %359 = vmatpush1.msra.mxu0 %v110
    %360 = vmatprep.subr.mxu0 %v108
    %361 = vmatpush1.msra.mxu0 %v107
    %362 = vmatprep.subr.mxu0 %v105
    %363 = vmatpush1.msra.mxu0 %v104
    %364 = vmatprep.subr.mxu0 %v102
    %365 = vmatpush1.msra.mxu0 %v101
    %366 = vmatprep.subr.mxu0 %v99
    %367 = vmatpush1.msra.mxu0 %v98
    %368 = vmatprep.subr.mxu0 %v96
    %369 = vmatpush1.msra.mxu0 %v95
    %370 = vmatprep.subr.mxu0 %v93
    %371 = vmatpush1.msra.mxu0 %v92
    %372 = vmatprep.subr.mxu0 %v90
    %373 = vmatpush1.msra.mxu0 %v89
    %374 = vmatprep.subr.mxu0 %v87
    %375 = vmatpush1.msra.mxu0 %v86
    %376 = vmatprep.subr.mxu0 %v84
    %377 = vmatpush1.msra.mxu0 %v83
    %378 = vmatprep.subr.mxu0 %v81
    %379 = vmatpush1.msra.mxu0 %v80
    %380 = vmatprep.subr.mxu0 %v78
    %381 = vmatpush1.msra.mxu0 %v77
    %382 = vmatprep.subr.mxu0 %v75
    %383 = vmatpush1.msra.mxu0 %v74
    %384 = vmatprep.subr.mxu0 %v72
    %385 = vmatpush1.msra.mxu0 %v71
    %386 = vmatprep.subr.mxu0 %v69
    %387 = vmatpush1.msra.mxu0 %v68
    %388 = vmatprep.subr.mxu0 %v162
    %389 = vmatpush2.msra.mxu0 %v161
    %390 = vmatprep.subr.mxu0 %v159
    %391 = vmatpush2.msra.mxu0 %v158
    %392 = vmatprep.subr.mxu0 %v156
    %393 = vmatpush2.msra.mxu0 %v155
    %394 = vmatprep.subr.mxu0 %v153
    %395 = vmatpush2.msra.mxu0 %v152
    %396 = vmatprep.subr.mxu0 %v150
    %397 = vmatpush2.msra.mxu0 %v149
    %398 = vmatprep.subr.mxu0 %v147
    %399 = vmatpush2.msra.mxu0 %v146
    %400 = vmatprep.subr.mxu0 %v144
    %401 = vmatpush2.msra.mxu0 %v143
    %402 = vmatprep.subr.mxu0 %v141
    %403 = vmatpush2.msra.mxu0 %v140
    %404 = vmatprep.subr.mxu0 %v138
    %405 = vmatpush2.msra.mxu0 %v137
    %406 = vmatprep.subr.mxu0 %v135
    %407 = vmatpush2.msra.mxu0 %v134
    %408 = vmatprep.subr.mxu0 %v132
    %409 = vmatpush2.msra.mxu0 %v131
    %410 = vmatprep.subr.mxu0 %v129
    %411 = vmatpush2.msra.mxu0 %v128
    %412 = vmatprep.subr.mxu0 %v126
    %413 = vmatpush2.msra.mxu0 %v125
    %414 = vmatprep.subr.mxu0 %v123
    %415 = vmatpush2.msra.mxu0 %v122
    %416 = vmatprep.subr.mxu0 %v120
    %417 = vmatpush2.msra.mxu0 %v119
    %418 = vmatprep.subr.mxu0 %v117
    %419 = vmatpush2.msra.mxu0 %v116
    %420 = vmatprep.mubr.f32.mxu0 %v57
    %421 = vmatmul.mubr.f32.gmra.mxu0 %v56
    %v422 = vpop.f32.mrf.mxu0
    %v423 = vadd.f32 0.0, %v422
    %v424 = vpop.f32.mrf.mxu0
    %v425 = vadd.f32 0.0, %v424
    %426 = vmatprep.mubr.f32.mxu0 %v63
    %427 = vmatmul.mubr.f32.gmra.mxu0 %v62
    %v428 = vpop.f32.mrf.mxu0
    %v429 = vadd.f32 0.0, %v428
    %v430 = vpop.f32.mrf.mxu0
    %v431 = vadd.f32 0.0, %v430
    %432 = vdwg.mxu0
    %433 = vmatprep.subr.mxu0 %v210
    %434 = vmatpush1.msra.mxu0 %v209
    %435 = vmatprep.subr.mxu0 %v207
    %436 = vmatpush1.msra.mxu0 %v206
    %437 = vmatprep.subr.mxu0 %v204
    %438 = vmatpush1.msra.mxu0 %v203
    %439 = vmatprep.subr.mxu0 %v201
    %440 = vmatpush1.msra.mxu0 %v200
    %441 = vmatprep.subr.mxu0 %v198
    %442 = vmatpush1.msra.mxu0 %v197
    %443 = vmatprep.subr.mxu0 %v195
    %444 = vmatpush1.msra.mxu0 %v194
    %445 = vmatprep.subr.mxu0 %v192
    %446 = vmatpush1.msra.mxu0 %v191
    %447 = vmatprep.subr.mxu0 %v189
    %448 = vmatpush1.msra.mxu0 %v188
    %449 = vmatprep.subr.mxu0 %v186
    %450 = vmatpush1.msra.mxu0 %v185
    %451 = vmatprep.subr.mxu0 %v183
    %452 = vmatpush1.msra.mxu0 %v182
    %453 = vmatprep.subr.mxu0 %v180
    %454 = vmatpush1.msra.mxu0 %v179
    %455 = vmatprep.subr.mxu0 %v177
    %456 = vmatpush1.msra.mxu0 %v176
    %457 = vmatprep.subr.mxu0 %v174
    %458 = vmatpush1.msra.mxu0 %v173
    %459 = vmatprep.subr.mxu0 %v171
    %460 = vmatpush1.msra.mxu0 %v170
    %461 = vmatprep.subr.mxu0 %v168
    %462 = vmatpush1.msra.mxu0 %v167
    %463 = vmatprep.subr.mxu0 %v165
    %464 = vmatpush1.msra.mxu0 %v164
    %465 = vmatprep.subr.mxu0 %v258
    %466 = vmatpush2.msra.mxu0 %v257
    %467 = vmatprep.subr.mxu0 %v255
    %468 = vmatpush2.msra.mxu0 %v254
    %469 = vmatprep.subr.mxu0 %v252
    %470 = vmatpush2.msra.mxu0 %v251
    %471 = vmatprep.subr.mxu0 %v249
    %472 = vmatpush2.msra.mxu0 %v248
    %473 = vmatprep.subr.mxu0 %v246
    %474 = vmatpush2.msra.mxu0 %v245
    %475 = vmatprep.subr.mxu0 %v243
    %476 = vmatpush2.msra.mxu0 %v242
    %477 = vmatprep.subr.mxu0 %v240
    %478 = vmatpush2.msra.mxu0 %v239
    %479 = vmatprep.subr.mxu0 %v237
    %480 = vmatpush2.msra.mxu0 %v236
    %481 = vmatprep.subr.mxu0 %v234
    %482 = vmatpush2.msra.mxu0 %v233
    %483 = vmatprep.subr.mxu0 %v231
    %484 = vmatpush2.msra.mxu0 %v230
    %485 = vmatprep.subr.mxu0 %v228
    %486 = vmatpush2.msra.mxu0 %v227
    %487 = vmatprep.subr.mxu0 %v225
    %488 = vmatpush2.msra.mxu0 %v224
    %489 = vmatprep.subr.mxu0 %v222
    %490 = vmatpush2.msra.mxu0 %v221
    %491 = vmatprep.subr.mxu0 %v219
    %492 = vmatpush2.msra.mxu0 %v218
    %493 = vmatprep.subr.mxu0 %v216
    %494 = vmatpush2.msra.mxu0 %v215
    %495 = vmatprep.subr.mxu0 %v213
    %496 = vmatpush2.msra.mxu0 %v212
    %497 = vmatprep.mubr.f32.mxu0 %v59
    %498 = vmatmul.mubr.f32.gmra.mxu0 %v58
    %v499 = vpop.f32.mrf.mxu0
    %v500 = vadd.f32 %v423, %v499
    %v501 = vpop.f32.mrf.mxu0
    %v502 = vadd.f32 %v425, %v501
    %503 = vmatprep.mubr.f32.mxu0 %v65
    %504 = vmatmul.mubr.f32.gmra.mxu0 %v64
    %v505 = vpop.f32.mrf.mxu0
    %v506 = vadd.f32 %v429, %v505
    %v507 = vpop.f32.mrf.mxu0
    %v508 = vadd.f32 %v431, %v507
    %509 = vdwg.mxu0
    %510 = vmatprep.subr.mxu0 %v306
    %511 = vmatpush1.msra.mxu0 %v305
    %512 = vmatprep.subr.mxu0 %v303
    %513 = vmatpush1.msra.mxu0 %v302
    %514 = vmatprep.subr.mxu0 %v300
    %515 = vmatpush1.msra.mxu0 %v299
    %516 = vmatprep.subr.mxu0 %v297
    %517 = vmatpush1.msra.mxu0 %v296
    %518 = vmatprep.subr.mxu0 %v294
    %519 = vmatpush1.msra.mxu0 %v293
    %520 = vmatprep.subr.mxu0 %v291
    %521 = vmatpush1.msra.mxu0 %v290
    %522 = vmatprep.subr.mxu0 %v288
    %523 = vmatpush1.msra.mxu0 %v287
    %524 = vmatprep.subr.mxu0 %v285
    %525 = vmatpush1.msra.mxu0 %v284
    %526 = vmatprep.subr.mxu0 %v282
    %527 = vmatpush1.msra.mxu0 %v281
    %528 = vmatprep.subr.mxu0 %v279
    %529 = vmatpush1.msra.mxu0 %v278
    %530 = vmatprep.subr.mxu0 %v276
    %531 = vmatpush1.msra.mxu0 %v275
    %532 = vmatprep.subr.mxu0 %v273
    %533 = vmatpush1.msra.mxu0 %v272
    %534 = vmatprep.subr.mxu0 %v270
    %535 = vmatpush1.msra.mxu0 %v269
    %536 = vmatprep.subr.mxu0 %v267
    %537 = vmatpush1.msra.mxu0 %v266
    %538 = vmatprep.subr.mxu0 %v264
    %539 = vmatpush1.msra.mxu0 %v263
    %540 = vmatprep.subr.mxu0 %v261
    %541 = vmatpush1.msra.mxu0 %v260
    %542 = vmatprep.subr.mxu0 %v354
    %543 = vmatpush2.msra.mxu0 %v353
    %544 = vmatprep.subr.mxu0 %v351
    %545 = vmatpush2.msra.mxu0 %v350
    %546 = vmatprep.subr.mxu0 %v348
    %547 = vmatpush2.msra.mxu0 %v347
    %548 = vmatprep.subr.mxu0 %v345
    %549 = vmatpush2.msra.mxu0 %v344
    %550 = vmatprep.subr.mxu0 %v342
    %551 = vmatpush2.msra.mxu0 %v341
    %552 = vmatprep.subr.mxu0 %v339
    %553 = vmatpush2.msra.mxu0 %v338
    %554 = vmatprep.subr.mxu0 %v336
    %555 = vmatpush2.msra.mxu0 %v335
    %556 = vmatprep.subr.mxu0 %v333
    %557 = vmatpush2.msra.mxu0 %v332
    %558 = vmatprep.subr.mxu0 %v330
    %559 = vmatpush2.msra.mxu0 %v329
    %560 = vmatprep.subr.mxu0 %v327
    %561 = vmatpush2.msra.mxu0 %v326
    %562 = vmatprep.subr.mxu0 %v324
    %563 = vmatpush2.msra.mxu0 %v323
    %564 = vmatprep.subr.mxu0 %v321
    %565 = vmatpush2.msra.mxu0 %v320
    %566 = vmatprep.subr.mxu0 %v318
    %567 = vmatpush2.msra.mxu0 %v317
    %568 = vmatprep.subr.mxu0 %v315
    %569 = vmatpush2.msra.mxu0 %v314
    %570 = vmatprep.subr.mxu0 %v312
    %571 = vmatpush2.msra.mxu0 %v311
    %572 = vmatprep.subr.mxu0 %v309
    %573 = vmatpush2.msra.mxu0 %v308
    %574 = vmatprep.mubr.f32.mxu0 %v61
    %575 = vmatmul.mubr.f32.gmra.mxu0 %v60
    %v576 = vpop.f32.mrf.mxu0
    %v577 = vadd.f32 %v500, %v576
    %v578 = vpop.f32.mrf.mxu0
    %v579 = vadd.f32 %v502, %v578
    %580 = vmatprep.mubr.f32.mxu0 %v67
    %581 = vmatmul.mubr.f32.gmra.mxu0 %v66
    %v582 = vpop.f32.mrf.mxu0
    %v583 = vadd.f32 %v506, %v582
    %v584 = vpop.f32.mrf.mxu0
    %v585 = vadd.f32 %v508, %v584
    %586 = vdwg.mxu0
    %587 = vmatprep.subr.mxu0 0.0
    %588 = vmatpush1.msra.mxu0 %v115
    %589 = vmatprep.subr.mxu0 0.0
    %590 = vmatpush1.msra.mxu0 %v112
    %591 = vmatprep.subr.mxu0 0.0
    %592 = vmatpush1.msra.mxu0 %v109
    %593 = vmatprep.subr.mxu0 0.0
    %594 = vmatpush1.msra.mxu0 %v106
    %595 = vmatprep.subr.mxu0 0.0
    %596 = vmatpush1.msra.mxu0 %v103
    %597 = vmatprep.subr.mxu0 0.0
    %598 = vmatpush1.msra.mxu0 %v100
    %599 = vmatprep.subr.mxu0 0.0
    %600 = vmatpush1.msra.mxu0 %v97
    %601 = vmatprep.subr.mxu0 0.0
    %602 = vmatpush1.msra.mxu0 %v94
    %603 = vmatprep.subr.mxu0 0.0
    %604 = vmatpush1.msra.mxu0 %v91
    %605 = vmatprep.subr.mxu0 0.0
    %606 = vmatpush1.msra.mxu0 %v88
    %607 = vmatprep.subr.mxu0 0.0
    %608 = vmatpush1.msra.mxu0 %v85
    %609 = vmatprep.subr.mxu0 0.0
    %610 = vmatpush1.msra.mxu0 %v82
    %611 = vmatprep.subr.mxu0 0.0
    %612 = vmatpush1.msra.mxu0 %v79
    %613 = vmatprep.subr.mxu0 0.0
    %614 = vmatpush1.msra.mxu0 %v76
    %615 = vmatprep.subr.mxu0 0.0
    %616 = vmatpush1.msra.mxu0 %v73
    %617 = vmatprep.subr.mxu0 0.0
    %618 = vmatpush1.msra.mxu0 %v70
    %619 = vmatprep.subr.mxu0 0.0
    %620 = vmatpush2.msra.mxu0 %v163
    %621 = vmatprep.subr.mxu0 0.0
    %622 = vmatpush2.msra.mxu0 %v160
    %623 = vmatprep.subr.mxu0 0.0
    %624 = vmatpush2.msra.mxu0 %v157
    %625 = vmatprep.subr.mxu0 0.0
    %626 = vmatpush2.msra.mxu0 %v154
    %627 = vmatprep.subr.mxu0 0.0
    %628 = vmatpush2.msra.mxu0 %v151
    %629 = vmatprep.subr.mxu0 0.0
    %630 = vmatpush2.msra.mxu0 %v148
    %631 = vmatprep.subr.mxu0 0.0
    %632 = vmatpush2.msra.mxu0 %v145
    %633 = vmatprep.subr.mxu0 0.0
    %634 = vmatpush2.msra.mxu0 %v142
    %635 = vmatprep.subr.mxu0 0.0
    %636 = vmatpush2.msra.mxu0 %v139
    %637 = vmatprep.subr.mxu0 0.0
    %638 = vmatpush2.msra.mxu0 %v136
    %639 = vmatprep.subr.mxu0 0.0
    %640 = vmatpush2.msra.mxu0 %v133
    %641 = vmatprep.subr.mxu0 0.0
    %642 = vmatpush2.msra.mxu0 %v130
    %643 = vmatprep.subr.mxu0 0.0
    %644 = vmatpush2.msra.mxu0 %v127
    %645 = vmatprep.subr.mxu0 0.0
    %646 = vmatpush2.msra.mxu0 %v124
    %647 = vmatprep.subr.mxu0 0.0
    %648 = vmatpush2.msra.mxu0 %v121
    %649 = vmatprep.subr.mxu0 0.0
    %650 = vmatpush2.msra.mxu0 %v118
    %651 = vmatprep.mubr.f32.mxu0 %v57
    %652 = vmatmul.mubr.f32.gmra.mxu0 %v56
    %v653 = vpop.f32.mrf.mxu0
    %v654 = vadd.f32 0.0, %v653
    %v655 = vpop.f32.mrf.mxu0
    %656 = vmatprep.mubr.f32.mxu0 %v63
    %657 = vmatmul.mubr.f32.gmra.mxu0 %v62
    %v658 = vpop.f32.mrf.mxu0
    %v659 = vadd.f32 0.0, %v658
    %v660 = vpop.f32.mrf.mxu0
    %661 = vdwg.mxu0
    %662 = vmatprep.subr.mxu0 0.0
    %663 = vmatpush1.msra.mxu0 %v211
    %664 = vmatprep.subr.mxu0 0.0
    %665 = vmatpush1.msra.mxu0 %v208
    %666 = vmatprep.subr.mxu0 0.0
    %667 = vmatpush1.msra.mxu0 %v205
    %668 = vmatprep.subr.mxu0 0.0
    %669 = vmatpush1.msra.mxu0 %v202
    %670 = vmatprep.subr.mxu0 0.0
    %671 = vmatpush1.msra.mxu0 %v199
    %672 = vmatprep.subr.mxu0 0.0
    %673 = vmatpush1.msra.mxu0 %v196
    %674 = vmatprep.subr.mxu0 0.0
    %675 = vmatpush1.msra.mxu0 %v193
    %676 = vmatprep.subr.mxu0 0.0
    %677 = vmatpush1.msra.mxu0 %v190
    %678 = vmatprep.subr.mxu0 0.0
    %679 = vmatpush1.msra.mxu0 %v187
    %680 = vmatprep.subr.mxu0 0.0
    %681 = vmatpush1.msra.mxu0 %v184
    %682 = vmatprep.subr.mxu0 0.0
    %683 = vmatpush1.msra.mxu0 %v181
    %684 = vmatprep.subr.mxu0 0.0
    %685 = vmatpush1.msra.mxu0 %v178
    %686 = vmatprep.subr.mxu0 0.0
    %687 = vmatpush1.msra.mxu0 %v175
    %688 = vmatprep.subr.mxu0 0.0
    %689 = vmatpush1.msra.mxu0 %v172
    %690 = vmatprep.subr.mxu0 0.0
    %691 = vmatpush1.msra.mxu0 %v169
    %692 = vmatprep.subr.mxu0 0.0
    %693 = vmatpush1.msra.mxu0 %v166
    %694 = vmatprep.subr.mxu0 0.0
    %695 = vmatpush2.msra.mxu0 %v259
    %696 = vmatprep.subr.mxu0 0.0
    %697 = vmatpush2.msra.mxu0 %v256
    %698 = vmatprep.subr.mxu0 0.0
    %699 = vmatpush2.msra.mxu0 %v253
    %700 = vmatprep.subr.mxu0 0.0
    %701 = vmatpush2.msra.mxu0 %v250
    %702 = vmatprep.subr.mxu0 0.0
    %703 = vmatpush2.msra.mxu0 %v247
    %704 = vmatprep.subr.mxu0 0.0
    %705 = vmatpush2.msra.mxu0 %v244
    %706 = vmatprep.subr.mxu0 0.0
    %707 = vmatpush2.msra.mxu0 %v241
    %708 = vmatprep.subr.mxu0 0.0
    %709 = vmatpush2.msra.mxu0 %v238
    %710 = vmatprep.subr.mxu0 0.0
    %711 = vmatpush2.msra.mxu0 %v235
    %712 = vmatprep.subr.mxu0 0.0
    %713 = vmatpush2.msra.mxu0 %v232
    %714 = vmatprep.subr.mxu0 0.0
    %715 = vmatpush2.msra.mxu0 %v229
    %716 = vmatprep.subr.mxu0 0.0
    %717 = vmatpush2.msra.mxu0 %v226
    %718 = vmatprep.subr.mxu0 0.0
    %719 = vmatpush2.msra.mxu0 %v223
    %720 = vmatprep.subr.mxu0 0.0
    %721 = vmatpush2.msra.mxu0 %v220
    %722 = vmatprep.subr.mxu0 0.0
    %723 = vmatpush2.msra.mxu0 %v217
    %724 = vmatprep.subr.mxu0 0.0
    %725 = vmatpush2.msra.mxu0 %v214
    %726 = vmatprep.mubr.f32.mxu0 %v59
    %727 = vmatmul.mubr.f32.gmra.mxu0 %v58
    %v728 = vpop.f32.mrf.mxu0
    %v729 = vadd.f32 %v654, %v728
    %v730 = vpop.f32.mrf.mxu0
    %731 = vmatprep.mubr.f32.mxu0 %v65
    %732 = vmatmul.mubr.f32.gmra.mxu0 %v64
    %v733 = vpop.f32.mrf.mxu0
    %v734 = vadd.f32 %v659, %v733
    %v735 = vpop.f32.mrf.mxu0
    %736 = vdwg.mxu0
    %737 = vmatprep.subr.mxu0 0.0
    %738 = vmatpush1.msra.mxu0 %v307
    %739 = vmatprep.subr.mxu0 0.0
    %740 = vmatpush1.msra.mxu0 %v304
    %741 = vmatprep.subr.mxu0 0.0
    %742 = vmatpush1.msra.mxu0 %v301
    %743 = vmatprep.subr.mxu0 0.0
    %744 = vmatpush1.msra.mxu0 %v298
    %745 = vmatprep.subr.mxu0 0.0
    %746 = vmatpush1.msra.mxu0 %v295
    %747 = vmatprep.subr.mxu0 0.0
    %748 = vmatpush1.msra.mxu0 %v292
    %749 = vmatprep.subr.mxu0 0.0
    %750 = vmatpush1.msra.mxu0 %v289
    %751 = vmatprep.subr.mxu0 0.0
    %752 = vmatpush1.msra.mxu0 %v286
    %753 = vmatprep.subr.mxu0 0.0
    %754 = vmatpush1.msra.mxu0 %v283
    %755 = vmatprep.subr.mxu0 0.0
    %756 = vmatpush1.msra.mxu0 %v280
    %757 = vmatprep.subr.mxu0 0.0
    %758 = vmatpush1.msra.mxu0 %v277
    %759 = vmatprep.subr.mxu0 0.0
    %760 = vmatpush1.msra.mxu0 %v274
    %761 = vmatprep.subr.mxu0 0.0
    %762 = vmatpush1.msra.mxu0 %v271
    %763 = vmatprep.subr.mxu0 0.0
    %764 = vmatpush1.msra.mxu0 %v268
    %765 = vmatprep.subr.mxu0 0.0
    %766 = vmatpush1.msra.mxu0 %v265
    %767 = vmatprep.subr.mxu0 0.0
    %768 = vmatpush1.msra.mxu0 %v262
    %769 = vmatprep.subr.mxu0 0.0
    %770 = vmatpush2.msra.mxu0 %v355
    %771 = vmatprep.subr.mxu0 0.0
    %772 = vmatpush2.msra.mxu0 %v352
    %773 = vmatprep.subr.mxu0 0.0
    %774 = vmatpush2.msra.mxu0 %v349
    %775 = vmatprep.subr.mxu0 0.0
    %776 = vmatpush2.msra.mxu0 %v346
    %777 = vmatprep.subr.mxu0 0.0
    %778 = vmatpush2.msra.mxu0 %v343
    %779 = vmatprep.subr.mxu0 0.0
    %780 = vmatpush2.msra.mxu0 %v340
    %781 = vmatprep.subr.mxu0 0.0
    %782 = vmatpush2.msra.mxu0 %v337
    %783 = vmatprep.subr.mxu0 0.0
    %784 = vmatpush2.msra.mxu0 %v334
    %785 = vmatprep.subr.mxu0 0.0
    %786 = vmatpush2.msra.mxu0 %v331
    %787 = vmatprep.subr.mxu0 0.0
    %788 = vmatpush2.msra.mxu0 %v328
    %789 = vmatprep.subr.mxu0 0.0
    %790 = vmatpush2.msra.mxu0 %v325
    %791 = vmatprep.subr.mxu0 0.0
    %792 = vmatpush2.msra.mxu0 %v322
    %793 = vmatprep.subr.mxu0 0.0
    %794 = vmatpush2.msra.mxu0 %v319
    %795 = vmatprep.subr.mxu0 0.0
    %796 = vmatpush2.msra.mxu0 %v316
    %797 = vmatprep.subr.mxu0 0.0
    %798 = vmatpush2.msra.mxu0 %v313
    %799 = vmatprep.subr.mxu0 0.0
    %800 = vmatpush2.msra.mxu0 %v310
    %801 = vmatprep.mubr.f32.mxu0 %v61
    %802 = vmatmul.mubr.f32.gmra.mxu0 %v60
    %v803 = vpop.f32.mrf.mxu0
    %v804 = vadd.f32 %v729, %v803
    %v805 = vpop.f32.mrf.mxu0
    %806 = vmatprep.mubr.f32.mxu0 %v67
    %807 = vmatmul.mubr.f32.gmra.mxu0 %v66
    %v808 = vpop.f32.mrf.mxu0
    %v809 = vadd.f32 %v734, %v808
    %v810 = vpop.f32.mrf.mxu0
    %811 = vdwg.mxu0
    %v812 = vmax.f32 %v577, 0.0
    %v813 = vmax.f32 %v579, 0.0
    %v814 = vmax.f32 %v804, 0.0
    %v815 = vmax.f32 %v583, 0.0
    %v816 = vmax.f32 %v585, 0.0
    %v817 = vmax.f32 %v809, 0.0
    %v818 = vld [vmem:[#allocation7] sm:$0xff]
    %v819 = vld [vmem:[#allocation7 + $0x8] sm:$0xff]
    %v820 = vld [vmem:[#allocation7 + $0x10] sm:$0xff]
    %v821 = vld [vmem:[#allocation7 + $0x18] sm:$0xff]
    %v822 = vld [vmem:[#allocation7 + $0x20] sm:$0xff]
    %v823 = vld [vmem:[#allocation7 + $0x28] sm:$0xff]
    %v824 = vld [vmem:[#allocation7 + $0x30] sm:$0xff]
    %v825 = vld [vmem:[#allocation7 + $0x38] sm:$0xff]
    %v826 = vld [vmem:[#allocation7 + $0x40] sm:$0xff]
    %v827 = vld [vmem:[#allocation7 + $0x48] sm:$0xff]
    %v828 = vld [vmem:[#allocation7 + $0x50] sm:$0xff]
    %v829 = vld [vmem:[#allocation7 + $0x58] sm:$0xff]
    %v830 = vld [vmem:[#allocation7 + $0x60] sm:$0xff]
    %v831 = vld [vmem:[#allocation7 + $0x68] sm:$0xff]
    %v832 = vld [vmem:[#allocation7 + $0x70] sm:$0xff]
    %v833 = vld [vmem:[#allocation7 + $0x78] sm:$0xff]
    %v834 = vld [vmem:[#allocation7 + $0x80] sm:$0xff]
    %v835 = vld [vmem:[#allocation7 + $0x88] sm:$0xff]
    %v836 = vld [vmem:[#allocation7 + $0x90] sm:$0xff]
    %v837 = vld [vmem:[#allocation7 + $0x98] sm:$0xff]
    %v838 = vld [vmem:[#allocation7 + $0xa0] sm:$0xff]
    %v839 = vld [vmem:[#allocation7 + $0xa8] sm:$0xff]
    %v840 = vld [vmem:[#allocation7 + $0xb0] sm:$0xff]
    %v841 = vld [vmem:[#allocation7 + $0xb8] sm:$0xff]
    %v842 = vld [vmem:[#allocation7 + $0xc0] sm:$0xff]
    %v843 = vld [vmem:[#allocation7 + $0xc8] sm:$0xff]
    %v844 = vld [vmem:[#allocation7 + $0xd0] sm:$0xff]
    %v845 = vld [vmem:[#allocation7 + $0xd8] sm:$0xff]
    %v846 = vld [vmem:[#allocation7 + $0xe0] sm:$0xff]
    %v847 = vld [vmem:[#allocation7 + $0xe8] sm:$0xff]
    %v848 = vld [vmem:[#allocation7 + $0xf0] sm:$0xff]
    %v849 = vld [vmem:[#allocation7 + $0xf8] sm:$0xff]
    %v850 = vld [vmem:[#allocation7 + $0x100] sm:$0xff]
    %v851 = vld [vmem:[#allocation7 + $0x108] sm:$0xff]
    %v852 = vld [vmem:[#allocation7 + $0x110] sm:$0xff]
    %v853 = vld [vmem:[#allocation7 + $0x118] sm:$0xff]
    %v854 = vld [vmem:[#allocation7 + $0x120] sm:$0xff]
    %v855 = vld [vmem:[#allocation7 + $0x128] sm:$0xff]
    %v856 = vld [vmem:[#allocation7 + $0x130] sm:$0xff]
    %v857 = vld [vmem:[#allocation7 + $0x138] sm:$0xff]
    %v858 = vld [vmem:[#allocation7 + $0x140] sm:$0xff]
    %v859 = vld [vmem:[#allocation7 + $0x148] sm:$0xff]
    %v860 = vld [vmem:[#allocation7 + $0x150] sm:$0xff]
    %v861 = vld [vmem:[#allocation7 + $0x158] sm:$0xff]
    %v862 = vld [vmem:[#allocation7 + $0x160] sm:$0xff]
    %v863 = vld [vmem:[#allocation7 + $0x168] sm:$0xff]
    %v864 = vld [vmem:[#allocation7 + $0x170] sm:$0xff]
    %v865 = vld [vmem:[#allocation7 + $0x178] sm:$0xff]
    %v866 = vld [vmem:[#allocation7 + $0x180] sm:$0xff]
    %v867 = vld [vmem:[#allocation7 + $0x188] sm:$0xff]
    %v868 = vld [vmem:[#allocation7 + $0x190] sm:$0xff]
    %v869 = vld [vmem:[#allocation7 + $0x198] sm:$0xff]
    %v870 = vld [vmem:[#allocation7 + $0x1a0] sm:$0xff]
    %v871 = vld [vmem:[#allocation7 + $0x1a8] sm:$0xff]
    %v872 = vld [vmem:[#allocation7 + $0x1b0] sm:$0xff]
    %v873 = vld [vmem:[#allocation7 + $0x1b8] sm:$0xff]
    %v874 = vld [vmem:[#allocation7 + $0x1c0] sm:$0xff]
    %v875 = vld [vmem:[#allocation7 + $0x1c8] sm:$0xff]
    %v876 = vld [vmem:[#allocation7 + $0x1d0] sm:$0xff]
    %v877 = vld [vmem:[#allocation7 + $0x1d8] sm:$0xff]
    %v878 = vld [vmem:[#allocation7 + $0x1e0] sm:$0xff]
    %v879 = vld [vmem:[#allocation7 + $0x1e8] sm:$0xff]
    %v880 = vld [vmem:[#allocation7 + $0x1f0] sm:$0xff]
    %v881 = vld [vmem:[#allocation7 + $0x1f8] sm:$0xff]
    %v882 = vld [vmem:[#allocation7 + $0x200] sm:$0xff]
    %v883 = vld [vmem:[#allocation7 + $0x208] sm:$0xff]
    %v884 = vld [vmem:[#allocation7 + $0x210] sm:$0xff]
    %v885 = vld [vmem:[#allocation7 + $0x218] sm:$0xff]
    %v886 = vld [vmem:[#allocation7 + $0x220] sm:$0xff]
    %v887 = vld [vmem:[#allocation7 + $0x228] sm:$0xff]
    %v888 = vld [vmem:[#allocation7 + $0x230] sm:$0xff]
    %v889 = vld [vmem:[#allocation7 + $0x238] sm:$0xff]
    %v890 = vld [vmem:[#allocation7 + $0x240] sm:$0xff]
    %v891 = vld [vmem:[#allocation7 + $0x248] sm:$0xff]
    %v892 = vld [vmem:[#allocation7 + $0x250] sm:$0xff]
    %v893 = vld [vmem:[#allocation7 + $0x258] sm:$0xff]
    %v894 = vld [vmem:[#allocation7 + $0x260] sm:$0xff]
    %v895 = vld [vmem:[#allocation7 + $0x268] sm:$0xff]
    %v896 = vld [vmem:[#allocation7 + $0x270] sm:$0xff]
    %v897 = vld [vmem:[#allocation7 + $0x278] sm:$0xff]
    %v898 = vld [vmem:[#allocation7 + $0x280] sm:$0xff]
    %v899 = vld [vmem:[#allocation7 + $0x288] sm:$0xff]
    %v900 = vld [vmem:[#allocation7 + $0x290] sm:$0xff]
    %v901 = vld [vmem:[#allocation7 + $0x298] sm:$0xff]
    %v902 = vld [vmem:[#allocation7 + $0x2a0] sm:$0xff]
    %v903 = vld [vmem:[#allocation7 + $0x2a8] sm:$0xff]
    %v904 = vld [vmem:[#allocation7 + $0x2b0] sm:$0xff]
    %v905 = vld [vmem:[#allocation7 + $0x2b8] sm:$0xff]
    %v906 = vld [vmem:[#allocation7 + $0x2c0] sm:$0xff]
    %v907 = vld [vmem:[#allocation7 + $0x2c8] sm:$0xff]
    %v908 = vld [vmem:[#allocation7 + $0x2d0] sm:$0xff]
    %v909 = vld [vmem:[#allocation7 + $0x2d8] sm:$0xff]
    %v910 = vld [vmem:[#allocation7 + $0x2e0] sm:$0xff]
    %v911 = vld [vmem:[#allocation7 + $0x2e8] sm:$0xff]
    %v912 = vld [vmem:[#allocation7 + $0x2f0] sm:$0xff]
    %v913 = vld [vmem:[#allocation7 + $0x2f8] sm:$0xff]
    %v914 = vld [vmem:[#allocation7 + $0x300] sm:$0xff]
    %v915 = vld [vmem:[#allocation7 + $0x308] sm:$0xff]
    %v916 = vld [vmem:[#allocation7 + $0x310] sm:$0xff]
    %v917 = vld [vmem:[#allocation7 + $0x318] sm:$0xff]
    %v918 = vld [vmem:[#allocation7 + $0x320] sm:$0xff]
    %v919 = vld [vmem:[#allocation7 + $0x328] sm:$0xff]
    %v920 = vld [vmem:[#allocation7 + $0x330] sm:$0xff]
    %v921 = vld [vmem:[#allocation7 + $0x338] sm:$0xff]
    %v922 = vld [vmem:[#allocation7 + $0x340] sm:$0xff]
    %v923 = vld [vmem:[#allocation7 + $0x348] sm:$0xff]
    %v924 = vld [vmem:[#allocation7 + $0x350] sm:$0xff]
    %v925 = vld [vmem:[#allocation7 + $0x358] sm:$0xff]
    %v926 = vld [vmem:[#allocation7 + $0x360] sm:$0xff]
    %v927 = vld [vmem:[#allocation7 + $0x368] sm:$0xff]
    %v928 = vld [vmem:[#allocation7 + $0x370] sm:$0xff]
    %v929 = vld [vmem:[#allocation7 + $0x378] sm:$0xff]
    %v930 = vld [vmem:[#allocation7 + $0x380] sm:$0xff]
    %v931 = vld [vmem:[#allocation7 + $0x388] sm:$0xff]
    %v932 = vld [vmem:[#allocation7 + $0x390] sm:$0xff]
    %v933 = vld [vmem:[#allocation7 + $0x398] sm:$0xff]
    %v934 = vld [vmem:[#allocation7 + $0x3a0] sm:$0xff]
    %v935 = vld [vmem:[#allocation7 + $0x3a8] sm:$0xff]
    %v936 = vld [vmem:[#allocation7 + $0x3b0] sm:$0xff]
    %v937 = vld [vmem:[#allocation7 + $0x3b8] sm:$0xff]
    %v938 = vld [vmem:[#allocation7 + $0x3c0] sm:$0xff]
    %v939 = vld [vmem:[#allocation7 + $0x3c8] sm:$0xff]
    %v940 = vld [vmem:[#allocation7 + $0x3d0] sm:$0xff]
    %v941 = vld [vmem:[#allocation7 + $0x3d8] sm:$0xff]
    %v942 = vld [vmem:[#allocation7 + $0x3e0] sm:$0xff]
    %v943 = vld [vmem:[#allocation7 + $0x3e8] sm:$0xff]
    %v944 = vld [vmem:[#allocation7 + $0x3f0] sm:$0xff]
    %v945 = vld [vmem:[#allocation7 + $0x3f8] sm:$0xff]
    %v946 = vld [vmem:[#allocation7 + $0x400] sm:$0xff]
    %v947 = vld [vmem:[#allocation7 + $0x408] sm:$0xff]
    %v948 = vld [vmem:[#allocation7 + $0x410] sm:$0xff]
    %v949 = vld [vmem:[#allocation7 + $0x418] sm:$0xff]
    %v950 = vld [vmem:[#allocation7 + $0x420] sm:$0xff]
    %v951 = vld [vmem:[#allocation7 + $0x428] sm:$0xff]
    %v952 = vld [vmem:[#allocation7 + $0x430] sm:$0xff]
    %v953 = vld [vmem:[#allocation7 + $0x438] sm:$0xff]
    %v954 = vld [vmem:[#allocation7 + $0x440] sm:$0xff]
    %v955 = vld [vmem:[#allocation7 + $0x448] sm:$0xff]
    %v956 = vld [vmem:[#allocation7 + $0x450] sm:$0xff]
    %v957 = vld [vmem:[#allocation7 + $0x458] sm:$0xff]
    %v958 = vld [vmem:[#allocation7 + $0x460] sm:$0xff]
    %v959 = vld [vmem:[#allocation7 + $0x468] sm:$0xff]
    %v960 = vld [vmem:[#allocation7 + $0x470] sm:$0xff]
    %v961 = vld [vmem:[#allocation7 + $0x478] sm:$0xff]
    %v962 = vld [vmem:[#allocation7 + $0x480] sm:$0xff]
    %v963 = vld [vmem:[#allocation7 + $0x488] sm:$0xff]
    %v964 = vld [vmem:[#allocation7 + $0x490] sm:$0xff]
    %v965 = vld [vmem:[#allocation7 + $0x498] sm:$0xff]
    %v966 = vld [vmem:[#allocation7 + $0x4a0] sm:$0xff]
    %v967 = vld [vmem:[#allocation7 + $0x4a8] sm:$0xff]
    %v968 = vld [vmem:[#allocation7 + $0x4b0] sm:$0xff]
    %v969 = vld [vmem:[#allocation7 + $0x4b8] sm:$0xff]
    %v970 = vld [vmem:[#allocation7 + $0x4c0] sm:$0xff]
    %v971 = vld [vmem:[#allocation7 + $0x4c8] sm:$0xff]
    %v972 = vld [vmem:[#allocation7 + $0x4d0] sm:$0xff]
    %v973 = vld [vmem:[#allocation7 + $0x4d8] sm:$0xff]
    %v974 = vld [vmem:[#allocation7 + $0x4e0] sm:$0xff]
    %v975 = vld [vmem:[#allocation7 + $0x4e8] sm:$0xff]
    %v976 = vld [vmem:[#allocation7 + $0x4f0] sm:$0xff]
    %v977 = vld [vmem:[#allocation7 + $0x4f8] sm:$0xff]
    %v978 = vld [vmem:[#allocation7 + $0x500] sm:$0xff]
    %v979 = vld [vmem:[#allocation7 + $0x508] sm:$0xff]
    %v980 = vld [vmem:[#allocation7 + $0x510] sm:$0xff]
    %v981 = vld [vmem:[#allocation7 + $0x518] sm:$0xff]
    %v982 = vld [vmem:[#allocation7 + $0x520] sm:$0xff]
    %v983 = vld [vmem:[#allocation7 + $0x528] sm:$0xff]
    %v984 = vld [vmem:[#allocation7 + $0x530] sm:$0xff]
    %v985 = vld [vmem:[#allocation7 + $0x538] sm:$0xff]
    %v986 = vld [vmem:[#allocation7 + $0x540] sm:$0xff]
    %v987 = vld [vmem:[#allocation7 + $0x548] sm:$0xff]
    %v988 = vld [vmem:[#allocation7 + $0x550] sm:$0xff]
    %v989 = vld [vmem:[#allocation7 + $0x558] sm:$0xff]
    %v990 = vld [vmem:[#allocation7 + $0x560] sm:$0xff]
    %v991 = vld [vmem:[#allocation7 + $0x568] sm:$0xff]
    %v992 = vld [vmem:[#allocation7 + $0x570] sm:$0xff]
    %v993 = vld [vmem:[#allocation7 + $0x578] sm:$0xff]
    %v994 = vld [vmem:[#allocation7 + $0x580] sm:$0xff]
    %v995 = vld [vmem:[#allocation7 + $0x588] sm:$0xff]
    %v996 = vld [vmem:[#allocation7 + $0x590] sm:$0xff]
    %v997 = vld [vmem:[#allocation7 + $0x598] sm:$0xff]
    %v998 = vld [vmem:[#allocation7 + $0x5a0] sm:$0xff]
    %v999 = vld [vmem:[#allocation7 + $0x5a8] sm:$0xff]
    %v1000 = vld [vmem:[#allocation7 + $0x5b0] sm:$0xff]
    %v1001 = vld [vmem:[#allocation7 + $0x5b8] sm:$0xff]
    %v1002 = vld [vmem:[#allocation7 + $0x5c0] sm:$0xff]
    %v1003 = vld [vmem:[#allocation7 + $0x5c8] sm:$0xff]
    %v1004 = vld [vmem:[#allocation7 + $0x5d0] sm:$0xff]
    %v1005 = vld [vmem:[#allocation7 + $0x5d8] sm:$0xff]
    %v1006 = vld [vmem:[#allocation7 + $0x5e0] sm:$0xff]
    %v1007 = vld [vmem:[#allocation7 + $0x5e8] sm:$0xff]
    %v1008 = vld [vmem:[#allocation7 + $0x5f0] sm:$0xff]
    %v1009 = vld [vmem:[#allocation7 + $0x5f8] sm:$0xff]
    %v1010 = vld [vmem:[#allocation7 + $0x600] sm:$0xff]
    %v1011 = vld [vmem:[#allocation7 + $0x608] sm:$0xff]
    %v1012 = vld [vmem:[#allocation7 + $0x610] sm:$0xff]
    %v1013 = vld [vmem:[#allocation7 + $0x618] sm:$0xff]
    %v1014 = vld [vmem:[#allocation7 + $0x620] sm:$0xff]
    %v1015 = vld [vmem:[#allocation7 + $0x628] sm:$0xff]
    %v1016 = vld [vmem:[#allocation7 + $0x630] sm:$0xff]
    %v1017 = vld [vmem:[#allocation7 + $0x638] sm:$0xff]
    %v1018 = vld [vmem:[#allocation7 + $0x640] sm:$0xff]
    %v1019 = vld [vmem:[#allocation7 + $0x648] sm:$0xff]
    %v1020 = vld [vmem:[#allocation7 + $0x650] sm:$0xff]
    %v1021 = vld [vmem:[#allocation7 + $0x658] sm:$0xff]
    %v1022 = vld [vmem:[#allocation7 + $0x660] sm:$0xff]
    %v1023 = vld [vmem:[#allocation7 + $0x668] sm:$0xff]
    %v1024 = vld [vmem:[#allocation7 + $0x670] sm:$0xff]
    %v1025 = vld [vmem:[#allocation7 + $0x678] sm:$0xff]
    %v1026 = vld [vmem:[#allocation7 + $0x680] sm:$0xff]
    %v1027 = vld [vmem:[#allocation7 + $0x688] sm:$0xff]
    %v1028 = vld [vmem:[#allocation7 + $0x690] sm:$0xff]
    %v1029 = vld [vmem:[#allocation7 + $0x698] sm:$0xff]
    %v1030 = vld [vmem:[#allocation7 + $0x6a0] sm:$0xff]
    %v1031 = vld [vmem:[#allocation7 + $0x6a8] sm:$0xff]
    %v1032 = vld [vmem:[#allocation7 + $0x6b0] sm:$0xff]
    %v1033 = vld [vmem:[#allocation7 + $0x6b8] sm:$0xff]
    %v1034 = vld [vmem:[#allocation7 + $0x6c0] sm:$0xff]
    %v1035 = vld [vmem:[#allocation7 + $0x6c8] sm:$0xff]
    %v1036 = vld [vmem:[#allocation7 + $0x6d0] sm:$0xff]
    %v1037 = vld [vmem:[#allocation7 + $0x6d8] sm:$0xff]
    %v1038 = vld [vmem:[#allocation7 + $0x6e0] sm:$0xff]
    %v1039 = vld [vmem:[#allocation7 + $0x6e8] sm:$0xff]
    %v1040 = vld [vmem:[#allocation7 + $0x6f0] sm:$0xff]
    %v1041 = vld [vmem:[#allocation7 + $0x6f8] sm:$0xff]
    %v1042 = vld [vmem:[#allocation7 + $0x700] sm:$0xff]
    %v1043 = vld [vmem:[#allocation7 + $0x708] sm:$0xff]
    %v1044 = vld [vmem:[#allocation7 + $0x710] sm:$0xff]
    %v1045 = vld [vmem:[#allocation7 + $0x718] sm:$0xff]
    %v1046 = vld [vmem:[#allocation7 + $0x720] sm:$0xff]
    %v1047 = vld [vmem:[#allocation7 + $0x728] sm:$0xff]
    %v1048 = vld [vmem:[#allocation7 + $0x730] sm:$0xff]
    %v1049 = vld [vmem:[#allocation7 + $0x738] sm:$0xff]
    %v1050 = vld [vmem:[#allocation7 + $0x740] sm:$0xff]
    %v1051 = vld [vmem:[#allocation7 + $0x748] sm:$0xff]
    %v1052 = vld [vmem:[#allocation7 + $0x750] sm:$0xff]
    %v1053 = vld [vmem:[#allocation7 + $0x758] sm:$0xff]
    %v1054 = vld [vmem:[#allocation7 + $0x760] sm:$0xff]
    %v1055 = vld [vmem:[#allocation7 + $0x768] sm:$0xff]
    %v1056 = vld [vmem:[#allocation7 + $0x770] sm:$0xff]
    %v1057 = vld [vmem:[#allocation7 + $0x778] sm:$0xff]
    %v1058 = vld [vmem:[#allocation7 + $0x780] sm:$0xff]
    %v1059 = vld [vmem:[#allocation7 + $0x788] sm:$0xff]
    %v1060 = vld [vmem:[#allocation7 + $0x790] sm:$0xff]
    %v1061 = vld [vmem:[#allocation7 + $0x798] sm:$0xff]
    %v1062 = vld [vmem:[#allocation7 + $0x7a0] sm:$0xff]
    %v1063 = vld [vmem:[#allocation7 + $0x7a8] sm:$0xff]
    %v1064 = vld [vmem:[#allocation7 + $0x7b0] sm:$0xff]
    %v1065 = vld [vmem:[#allocation7 + $0x7b8] sm:$0xff]
    %v1066 = vld [vmem:[#allocation7 + $0x7c0] sm:$0xff]
    %v1067 = vld [vmem:[#allocation7 + $0x7c8] sm:$0xff]
    %v1068 = vld [vmem:[#allocation7 + $0x7d0] sm:$0xff]
    %v1069 = vld [vmem:[#allocation7 + $0x7d8] sm:$0xff]
    %v1070 = vld [vmem:[#allocation7 + $0x7e0] sm:$0xff]
    %v1071 = vld [vmem:[#allocation7 + $0x7e8] sm:$0xff]
    %v1072 = vld [vmem:[#allocation7 + $0x7f0] sm:$0xff]
    %v1073 = vld [vmem:[#allocation7 + $0x7f8] sm:$0xff]
    %v1074 = vld [vmem:[#allocation7 + $0x800] sm:$0xff]
    %v1075 = vld [vmem:[#allocation7 + $0x808] sm:$0xff]
    %v1076 = vld [vmem:[#allocation7 + $0x810] sm:$0xff]
    %v1077 = vld [vmem:[#allocation7 + $0x818] sm:$0xff]
    %v1078 = vld [vmem:[#allocation7 + $0x820] sm:$0xff]
    %v1079 = vld [vmem:[#allocation7 + $0x828] sm:$0xff]
    %v1080 = vld [vmem:[#allocation7 + $0x830] sm:$0xff]
    %v1081 = vld [vmem:[#allocation7 + $0x838] sm:$0xff]
    %v1082 = vld [vmem:[#allocation7 + $0x840] sm:$0xff]
    %v1083 = vld [vmem:[#allocation7 + $0x848] sm:$0xff]
    %v1084 = vld [vmem:[#allocation7 + $0x850] sm:$0xff]
    %v1085 = vld [vmem:[#allocation7 + $0x858] sm:$0xff]
    %v1086 = vld [vmem:[#allocation7 + $0x860] sm:$0xff]
    %v1087 = vld [vmem:[#allocation7 + $0x868] sm:$0xff]
    %v1088 = vld [vmem:[#allocation7 + $0x870] sm:$0xff]
    %v1089 = vld [vmem:[#allocation7 + $0x878] sm:$0xff]
    %v1090 = vld [vmem:[#allocation7 + $0x880] sm:$0xff]
    %v1091 = vld [vmem:[#allocation7 + $0x888] sm:$0xff]
    %v1092 = vld [vmem:[#allocation7 + $0x890] sm:$0xff]
    %v1093 = vld [vmem:[#allocation7 + $0x898] sm:$0xff]
    %v1094 = vld [vmem:[#allocation7 + $0x8a0] sm:$0xff]
    %v1095 = vld [vmem:[#allocation7 + $0x8a8] sm:$0xff]
    %v1096 = vld [vmem:[#allocation7 + $0x8b0] sm:$0xff]
    %v1097 = vld [vmem:[#allocation7 + $0x8b8] sm:$0xff]
    %v1098 = vld [vmem:[#allocation7 + $0x8c0] sm:$0xff]
    %v1099 = vld [vmem:[#allocation7 + $0x8c8] sm:$0xff]
    %v1100 = vld [vmem:[#allocation7 + $0x8d0] sm:$0xff]
    %v1101 = vld [vmem:[#allocation7 + $0x8d8] sm:$0xff]
    %v1102 = vld [vmem:[#allocation7 + $0x8e0] sm:$0xff]
    %v1103 = vld [vmem:[#allocation7 + $0x8e8] sm:$0xff]
    %v1104 = vld [vmem:[#allocation7 + $0x8f0] sm:$0xff]
    %v1105 = vld [vmem:[#allocation7 + $0x8f8] sm:$0xff]
    %1106 = vmatprep.subr.mxu0 %v909
    %1107 = vmatpush1.msra.mxu0 %v908
    %1108 = vmatprep.subr.mxu0 %v903
    %1109 = vmatpush1.msra.mxu0 %v902
    %1110 = vmatprep.subr.mxu0 %v897
    %1111 = vmatpush1.msra.mxu0 %v896
    %1112 = vmatprep.subr.mxu0 %v891
    %1113 = vmatpush1.msra.mxu0 %v890
    %1114 = vmatprep.subr.mxu0 %v885
    %1115 = vmatpush1.msra.mxu0 %v884
    %1116 = vmatprep.subr.mxu0 %v879
    %1117 = vmatpush1.msra.mxu0 %v878
    %1118 = vmatprep.subr.mxu0 %v873
    %1119 = vmatpush1.msra.mxu0 %v872
    %1120 = vmatprep.subr.mxu0 %v867
    %1121 = vmatpush1.msra.mxu0 %v866
    %1122 = vmatprep.subr.mxu0 %v861
    %1123 = vmatpush1.msra.mxu0 %v860
    %1124 = vmatprep.subr.mxu0 %v855
    %1125 = vmatpush1.msra.mxu0 %v854
    %1126 = vmatprep.subr.mxu0 %v849
    %1127 = vmatpush1.msra.mxu0 %v848
    %1128 = vmatprep.subr.mxu0 %v843
    %1129 = vmatpush1.msra.mxu0 %v842
    %1130 = vmatprep.subr.mxu0 %v837
    %1131 = vmatpush1.msra.mxu0 %v836
    %1132 = vmatprep.subr.mxu0 %v831
    %1133 = vmatpush1.msra.mxu0 %v830
    %1134 = vmatprep.subr.mxu0 %v825
    %1135 = vmatpush1.msra.mxu0 %v824
    %1136 = vmatprep.subr.mxu0 %v819
    %1137 = vmatpush1.msra.mxu0 %v818
    %1138 = vmatprep.subr.mxu0 %v1005
    %1139 = vmatpush2.msra.mxu0 %v1004
    %1140 = vmatprep.subr.mxu0 %v999
    %1141 = vmatpush2.msra.mxu0 %v998
    %1142 = vmatprep.subr.mxu0 %v993
    %1143 = vmatpush2.msra.mxu0 %v992
    %1144 = vmatprep.subr.mxu0 %v987
    %1145 = vmatpush2.msra.mxu0 %v986
    %1146 = vmatprep.subr.mxu0 %v981
    %1147 = vmatpush2.msra.mxu0 %v980
    %1148 = vmatprep.subr.mxu0 %v975
    %1149 = vmatpush2.msra.mxu0 %v974
    %1150 = vmatprep.subr.mxu0 %v969
    %1151 = vmatpush2.msra.mxu0 %v968
    %1152 = vmatprep.subr.mxu0 %v963
    %1153 = vmatpush2.msra.mxu0 %v962
    %1154 = vmatprep.subr.mxu0 %v957
    %1155 = vmatpush2.msra.mxu0 %v956
    %1156 = vmatprep.subr.mxu0 %v951
    %1157 = vmatpush2.msra.mxu0 %v950
    %1158 = vmatprep.subr.mxu0 %v945
    %1159 = vmatpush2.msra.mxu0 %v944
    %1160 = vmatprep.subr.mxu0 %v939
    %1161 = vmatpush2.msra.mxu0 %v938
    %1162 = vmatprep.subr.mxu0 %v933
    %1163 = vmatpush2.msra.mxu0 %v932
    %1164 = vmatprep.subr.mxu0 %v927
    %1165 = vmatpush2.msra.mxu0 %v926
    %1166 = vmatprep.subr.mxu0 %v921
    %1167 = vmatpush2.msra.mxu0 %v920
    %1168 = vmatprep.subr.mxu0 %v915
    %1169 = vmatpush2.msra.mxu0 %v914
    %1170 = vmatprep.mubr.f32.mxu0 %v813
    %1171 = vmatmul.mubr.f32.gmra.mxu0 %v812
    %v1172 = vpop.f32.mrf.mxu0
    %v1173 = vadd.f32 0.0, %v1172
    %v1174 = vpop.f32.mrf.mxu0
    %v1175 = vadd.f32 0.0, %v1174
    %1176 = vmatprep.mubr.f32.mxu0 %v816
    %1177 = vmatmul.mubr.f32.gmra.mxu0 %v815
    %v1178 = vpop.f32.mrf.mxu0
    %v1179 = vadd.f32 0.0, %v1178
    %v1180 = vpop.f32.mrf.mxu0
    %v1181 = vadd.f32 0.0, %v1180
    %1182 = vdwg.mxu0
    %1183 = vmatprep.subr.mxu0 %v1101
    %1184 = vmatpush1.msra.mxu0 %v1100
    %1185 = vmatprep.subr.mxu0 %v1095
    %1186 = vmatpush1.msra.mxu0 %v1094
    %1187 = vmatprep.subr.mxu0 %v1089
    %1188 = vmatpush1.msra.mxu0 %v1088
    %1189 = vmatprep.subr.mxu0 %v1083
    %1190 = vmatpush1.msra.mxu0 %v1082
    %1191 = vmatprep.subr.mxu0 %v1077
    %1192 = vmatpush1.msra.mxu0 %v1076
    %1193 = vmatprep.subr.mxu0 %v1071
    %1194 = vmatpush1.msra.mxu0 %v1070
    %1195 = vmatprep.subr.mxu0 %v1065
    %1196 = vmatpush1.msra.mxu0 %v1064
    %1197 = vmatprep.subr.mxu0 %v1059
    %1198 = vmatpush1.msra.mxu0 %v1058
    %1199 = vmatprep.subr.mxu0 %v1053
    %1200 = vmatpush1.msra.mxu0 %v1052
    %1201 = vmatprep.subr.mxu0 %v1047
    %1202 = vmatpush1.msra.mxu0 %v1046
    %1203 = vmatprep.subr.mxu0 %v1041
    %1204 = vmatpush1.msra.mxu0 %v1040
    %1205 = vmatprep.subr.mxu0 %v1035
    %1206 = vmatpush1.msra.mxu0 %v1034
    %1207 = vmatprep.subr.mxu0 %v1029
    %1208 = vmatpush1.msra.mxu0 %v1028
    %1209 = vmatprep.subr.mxu0 %v1023
    %1210 = vmatpush1.msra.mxu0 %v1022
    %1211 = vmatprep.subr.mxu0 %v1017
    %1212 = vmatpush1.msra.mxu0 %v1016
    %1213 = vmatprep.subr.mxu0 %v1011
    %1214 = vmatpush1.msra.mxu0 %v1010
    %1215 = vmatprep.subr.mxu0 0.0
    %1216 = vmatpush2.msra.mxu0 0.0
    %1217 = vmatprep.subr.mxu0 0.0
    %1218 = vmatpush2.msra.mxu0 0.0
    %1219 = vmatprep.subr.mxu0 0.0
    %1220 = vmatpush2.msra.mxu0 0.0
    %1221 = vmatprep.subr.mxu0 0.0
    %1222 = vmatpush2.msra.mxu0 0.0
    %1223 = vmatprep.subr.mxu0 0.0
    %1224 = vmatpush2.msra.mxu0 0.0
    %1225 = vmatprep.subr.mxu0 0.0
    %1226 = vmatpush2.msra.mxu0 0.0
    %1227 = vmatprep.subr.mxu0 0.0
    %1228 = vmatpush2.msra.mxu0 0.0
    %1229 = vmatprep.subr.mxu0 0.0
    %1230 = vmatpush2.msra.mxu0 0.0
    %1231 = vmatprep.subr.mxu0 0.0
    %1232 = vmatpush2.msra.mxu0 0.0
    %1233 = vmatprep.subr.mxu0 0.0
    %1234 = vmatpush2.msra.mxu0 0.0
    %1235 = vmatprep.subr.mxu0 0.0
    %1236 = vmatpush2.msra.mxu0 0.0
    %1237 = vmatprep.subr.mxu0 0.0
    %1238 = vmatpush2.msra.mxu0 0.0
    %1239 = vmatprep.subr.mxu0 0.0
    %1240 = vmatpush2.msra.mxu0 0.0
    %1241 = vmatprep.subr.mxu0 0.0
    %1242 = vmatpush2.msra.mxu0 0.0
    %1243 = vmatprep.subr.mxu0 0.0
    %1244 = vmatpush2.msra.mxu0 0.0
    %1245 = vmatprep.subr.mxu0 0.0
    %1246 = vmatpush2.msra.mxu0 0.0
    %1247 = vmatprep.mubr.f32.mxu0 0.0
    %1248 = vmatmul.mubr.f32.gmra.mxu0 %v814
    %v1249 = vpop.f32.mrf.mxu0
    %v1250 = vadd.f32 %v1173, %v1249
    %v1251 = vpop.f32.mrf.mxu0
    %v1252 = vadd.f32 %v1175, %v1251
    %1253 = vmatprep.mubr.f32.mxu0 0.0
    %1254 = vmatmul.mubr.f32.gmra.mxu0 %v817
    %v1255 = vpop.f32.mrf.mxu0
    %v1256 = vadd.f32 %v1179, %v1255
    %v1257 = vpop.f32.mrf.mxu0
    %v1258 = vadd.f32 %v1181, %v1257
    %1259 = vdwg.mxu0
    %1260 = vmatprep.subr.mxu0 %v911
    %1261 = vmatpush1.msra.mxu0 %v910
    %1262 = vmatprep.subr.mxu0 %v905
    %1263 = vmatpush1.msra.mxu0 %v904
    %1264 = vmatprep.subr.mxu0 %v899
    %1265 = vmatpush1.msra.mxu0 %v898
    %1266 = vmatprep.subr.mxu0 %v893
    %1267 = vmatpush1.msra.mxu0 %v892
    %1268 = vmatprep.subr.mxu0 %v887
    %1269 = vmatpush1.msra.mxu0 %v886
    %1270 = vmatprep.subr.mxu0 %v881
    %1271 = vmatpush1.msra.mxu0 %v880
    %1272 = vmatprep.subr.mxu0 %v875
    %1273 = vmatpush1.msra.mxu0 %v874
    %1274 = vmatprep.subr.mxu0 %v869
    %1275 = vmatpush1.msra.mxu0 %v868
    %1276 = vmatprep.subr.mxu0 %v863
    %1277 = vmatpush1.msra.mxu0 %v862
    %1278 = vmatprep.subr.mxu0 %v857
    %1279 = vmatpush1.msra.mxu0 %v856
    %1280 = vmatprep.subr.mxu0 %v851
    %1281 = vmatpush1.msra.mxu0 %v850
    %1282 = vmatprep.subr.mxu0 %v845
    %1283 = vmatpush1.msra.mxu0 %v844
    %1284 = vmatprep.subr.mxu0 %v839
    %1285 = vmatpush1.msra.mxu0 %v838
    %1286 = vmatprep.subr.mxu0 %v833
    %1287 = vmatpush1.msra.mxu0 %v832
    %1288 = vmatprep.subr.mxu0 %v827
    %1289 = vmatpush1.msra.mxu0 %v826
    %1290 = vmatprep.subr.mxu0 %v821
    %1291 = vmatpush1.msra.mxu0 %v820
    %1292 = vmatprep.subr.mxu0 %v1007
    %1293 = vmatpush2.msra.mxu0 %v1006
    %1294 = vmatprep.subr.mxu0 %v1001
    %1295 = vmatpush2.msra.mxu0 %v1000
    %1296 = vmatprep.subr.mxu0 %v995
    %1297 = vmatpush2.msra.mxu0 %v994
    %1298 = vmatprep.subr.mxu0 %v989
    %1299 = vmatpush2.msra.mxu0 %v988
    %1300 = vmatprep.subr.mxu0 %v983
    %1301 = vmatpush2.msra.mxu0 %v982
    %1302 = vmatprep.subr.mxu0 %v977
    %1303 = vmatpush2.msra.mxu0 %v976
    %1304 = vmatprep.subr.mxu0 %v971
    %1305 = vmatpush2.msra.mxu0 %v970
    %1306 = vmatprep.subr.mxu0 %v965
    %1307 = vmatpush2.msra.mxu0 %v964
    %1308 = vmatprep.subr.mxu0 %v959
    %1309 = vmatpush2.msra.mxu0 %v958
    %1310 = vmatprep.subr.mxu0 %v953
    %1311 = vmatpush2.msra.mxu0 %v952
    %1312 = vmatprep.subr.mxu0 %v947
    %1313 = vmatpush2.msra.mxu0 %v946
    %1314 = vmatprep.subr.mxu0 %v941
    %1315 = vmatpush2.msra.mxu0 %v940
    %1316 = vmatprep.subr.mxu0 %v935
    %1317 = vmatpush2.msra.mxu0 %v934
    %1318 = vmatprep.subr.mxu0 %v929
    %1319 = vmatpush2.msra.mxu0 %v928
    %1320 = vmatprep.subr.mxu0 %v923
    %1321 = vmatpush2.msra.mxu0 %v922
    %1322 = vmatprep.subr.mxu0 %v917
    %1323 = vmatpush2.msra.mxu0 %v916
    %1324 = vmatprep.mubr.f32.mxu0 %v813
    %1325 = vmatmul.mubr.f32.gmra.mxu0 %v812
    %v1326 = vpop.f32.mrf.mxu0
    %v1327 = vadd.f32 0.0, %v1326
    %v1328 = vpop.f32.mrf.mxu0
    %v1329 = vadd.f32 0.0, %v1328
    %1330 = vmatprep.mubr.f32.mxu0 %v816
    %1331 = vmatmul.mubr.f32.gmra.mxu0 %v815
    %v1332 = vpop.f32.mrf.mxu0
    %v1333 = vadd.f32 0.0, %v1332
    %v1334 = vpop.f32.mrf.mxu0
    %v1335 = vadd.f32 0.0, %v1334
    %1336 = vdwg.mxu0
    %1337 = vmatprep.subr.mxu0 %v1103
    %1338 = vmatpush1.msra.mxu0 %v1102
    %1339 = vmatprep.subr.mxu0 %v1097
    %1340 = vmatpush1.msra.mxu0 %v1096
    %1341 = vmatprep.subr.mxu0 %v1091
    %1342 = vmatpush1.msra.mxu0 %v1090
    %1343 = vmatprep.subr.mxu0 %v1085
    %1344 = vmatpush1.msra.mxu0 %v1084
    %1345 = vmatprep.subr.mxu0 %v1079
    %1346 = vmatpush1.msra.mxu0 %v1078
    %1347 = vmatprep.subr.mxu0 %v1073
    %1348 = vmatpush1.msra.mxu0 %v1072
    %1349 = vmatprep.subr.mxu0 %v1067
    %1350 = vmatpush1.msra.mxu0 %v1066
    %1351 = vmatprep.subr.mxu0 %v1061
    %1352 = vmatpush1.msra.mxu0 %v1060
    %1353 = vmatprep.subr.mxu0 %v1055
    %1354 = vmatpush1.msra.mxu0 %v1054
    %1355 = vmatprep.subr.mxu0 %v1049
    %1356 = vmatpush1.msra.mxu0 %v1048
    %1357 = vmatprep.subr.mxu0 %v1043
    %1358 = vmatpush1.msra.mxu0 %v1042
    %1359 = vmatprep.subr.mxu0 %v1037
    %1360 = vmatpush1.msra.mxu0 %v1036
    %1361 = vmatprep.subr.mxu0 %v1031
    %1362 = vmatpush1.msra.mxu0 %v1030
    %1363 = vmatprep.subr.mxu0 %v1025
    %1364 = vmatpush1.msra.mxu0 %v1024
    %1365 = vmatprep.subr.mxu0 %v1019
    %1366 = vmatpush1.msra.mxu0 %v1018
    %1367 = vmatprep.subr.mxu0 %v1013
    %1368 = vmatpush1.msra.mxu0 %v1012
    %1369 = vmatprep.subr.mxu0 0.0
    %1370 = vmatpush2.msra.mxu0 0.0
    %1371 = vmatprep.subr.mxu0 0.0
    %1372 = vmatpush2.msra.mxu0 0.0
    %1373 = vmatprep.subr.mxu0 0.0
    %1374 = vmatpush2.msra.mxu0 0.0
    %1375 = vmatprep.subr.mxu0 0.0
    %1376 = vmatpush2.msra.mxu0 0.0
    %1377 = vmatprep.subr.mxu0 0.0
    %1378 = vmatpush2.msra.mxu0 0.0
    %1379 = vmatprep.subr.mxu0 0.0
    %1380 = vmatpush2.msra.mxu0 0.0
    %1381 = vmatprep.subr.mxu0 0.0
    %1382 = vmatpush2.msra.mxu0 0.0
    %1383 = vmatprep.subr.mxu0 0.0
    %1384 = vmatpush2.msra.mxu0 0.0
    %1385 = vmatprep.subr.mxu0 0.0
    %1386 = vmatpush2.msra.mxu0 0.0
    %1387 = vmatprep.subr.mxu0 0.0
    %1388 = vmatpush2.msra.mxu0 0.0
    %1389 = vmatprep.subr.mxu0 0.0
    %1390 = vmatpush2.msra.mxu0 0.0
    %1391 = vmatprep.subr.mxu0 0.0
    %1392 = vmatpush2.msra.mxu0 0.0
    %1393 = vmatprep.subr.mxu0 0.0
    %1394 = vmatpush2.msra.mxu0 0.0
    %1395 = vmatprep.subr.mxu0 0.0
    %1396 = vmatpush2.msra.mxu0 0.0
    %1397 = vmatprep.subr.mxu0 0.0
    %1398 = vmatpush2.msra.mxu0 0.0
    %1399 = vmatprep.subr.mxu0 0.0
    %1400 = vmatpush2.msra.mxu0 0.0
    %1401 = vmatprep.mubr.f32.mxu0 0.0
    %1402 = vmatmul.mubr.f32.gmra.mxu0 %v814
    %v1403 = vpop.f32.mrf.mxu0
    %v1404 = vadd.f32 %v1327, %v1403
    %v1405 = vpop.f32.mrf.mxu0
    %v1406 = vadd.f32 %v1329, %v1405
    %1407 = vmatprep.mubr.f32.mxu0 0.0
    %1408 = vmatmul.mubr.f32.gmra.mxu0 %v817
    %v1409 = vpop.f32.mrf.mxu0
    %v1410 = vadd.f32 %v1333, %v1409
    %v1411 = vpop.f32.mrf.mxu0
    %v1412 = vadd.f32 %v1335, %v1411
    %1413 = vdwg.mxu0
    %1414 = vmatprep.subr.mxu0 %v913
    %1415 = vmatpush1.msra.mxu0 %v912
    %1416 = vmatprep.subr.mxu0 %v907
    %1417 = vmatpush1.msra.mxu0 %v906
    %1418 = vmatprep.subr.mxu0 %v901
    %1419 = vmatpush1.msra.mxu0 %v900
    %1420 = vmatprep.subr.mxu0 %v895
    %1421 = vmatpush1.msra.mxu0 %v894
    %1422 = vmatprep.subr.mxu0 %v889
    %1423 = vmatpush1.msra.mxu0 %v888
    %1424 = vmatprep.subr.mxu0 %v883
    %1425 = vmatpush1.msra.mxu0 %v882
    %1426 = vmatprep.subr.mxu0 %v877
    %1427 = vmatpush1.msra.mxu0 %v876
    %1428 = vmatprep.subr.mxu0 %v871
    %1429 = vmatpush1.msra.mxu0 %v870
    %1430 = vmatprep.subr.mxu0 %v865
    %1431 = vmatpush1.msra.mxu0 %v864
    %1432 = vmatprep.subr.mxu0 %v859
    %1433 = vmatpush1.msra.mxu0 %v858
    %1434 = vmatprep.subr.mxu0 %v853
    %1435 = vmatpush1.msra.mxu0 %v852
    %1436 = vmatprep.subr.mxu0 %v847
    %1437 = vmatpush1.msra.mxu0 %v846
    %1438 = vmatprep.subr.mxu0 %v841
    %1439 = vmatpush1.msra.mxu0 %v840
    %1440 = vmatprep.subr.mxu0 %v835
    %1441 = vmatpush1.msra.mxu0 %v834
    %1442 = vmatprep.subr.mxu0 %v829
    %1443 = vmatpush1.msra.mxu0 %v828
    %1444 = vmatprep.subr.mxu0 %v823
    %1445 = vmatpush1.msra.mxu0 %v822
    %1446 = vmatprep.subr.mxu0 %v1009
    %1447 = vmatpush2.msra.mxu0 %v1008
    %1448 = vmatprep.subr.mxu0 %v1003
    %1449 = vmatpush2.msra.mxu0 %v1002
    %1450 = vmatprep.subr.mxu0 %v997
    %1451 = vmatpush2.msra.mxu0 %v996
    %1452 = vmatprep.subr.mxu0 %v991
    %1453 = vmatpush2.msra.mxu0 %v990
    %1454 = vmatprep.subr.mxu0 %v985
    %1455 = vmatpush2.msra.mxu0 %v984
    %1456 = vmatprep.subr.mxu0 %v979
    %1457 = vmatpush2.msra.mxu0 %v978
    %1458 = vmatprep.subr.mxu0 %v973
    %1459 = vmatpush2.msra.mxu0 %v972
    %1460 = vmatprep.subr.mxu0 %v967
    %1461 = vmatpush2.msra.mxu0 %v966
    %1462 = vmatprep.subr.mxu0 %v961
    %1463 = vmatpush2.msra.mxu0 %v960
    %1464 = vmatprep.subr.mxu0 %v955
    %1465 = vmatpush2.msra.mxu0 %v954
    %1466 = vmatprep.subr.mxu0 %v949
    %1467 = vmatpush2.msra.mxu0 %v948
    %1468 = vmatprep.subr.mxu0 %v943
    %1469 = vmatpush2.msra.mxu0 %v942
    %1470 = vmatprep.subr.mxu0 %v937
    %1471 = vmatpush2.msra.mxu0 %v936
    %1472 = vmatprep.subr.mxu0 %v931
    %1473 = vmatpush2.msra.mxu0 %v930
    %1474 = vmatprep.subr.mxu0 %v925
    %1475 = vmatpush2.msra.mxu0 %v924
    %1476 = vmatprep.subr.mxu0 %v919
    %1477 = vmatpush2.msra.mxu0 %v918
    %1478 = vmatprep.mubr.f32.mxu0 %v813
    %1479 = vmatmul.mubr.f32.gmra.mxu0 %v812
    %v1480 = vpop.f32.mrf.mxu0
    %v1481 = vadd.f32 0.0, %v1480
    %v1482 = vpop.f32.mrf.mxu0
    %v1483 = vadd.f32 0.0, %v1482
    %1484 = vmatprep.mubr.f32.mxu0 %v816
    %1485 = vmatmul.mubr.f32.gmra.mxu0 %v815
    %v1486 = vpop.f32.mrf.mxu0
    %v1487 = vadd.f32 0.0, %v1486
    %v1488 = vpop.f32.mrf.mxu0
    %v1489 = vadd.f32 0.0, %v1488
    %1490 = vdwg.mxu0
    %1491 = vmatprep.subr.mxu0 %v1105
    %1492 = vmatpush1.msra.mxu0 %v1104
    %1493 = vmatprep.subr.mxu0 %v1099
    %1494 = vmatpush1.msra.mxu0 %v1098
    %1495 = vmatprep.subr.mxu0 %v1093
    %1496 = vmatpush1.msra.mxu0 %v1092
    %1497 = vmatprep.subr.mxu0 %v1087
    %1498 = vmatpush1.msra.mxu0 %v1086
    %1499 = vmatprep.subr.mxu0 %v1081
    %1500 = vmatpush1.msra.mxu0 %v1080
    %1501 = vmatprep.subr.mxu0 %v1075
    %1502 = vmatpush1.msra.mxu0 %v1074
    %1503 = vmatprep.subr.mxu0 %v1069
    %1504 = vmatpush1.msra.mxu0 %v1068
    %1505 = vmatprep.subr.mxu0 %v1063
    %1506 = vmatpush1.msra.mxu0 %v1062
    %1507 = vmatprep.subr.mxu0 %v1057
    %1508 = vmatpush1.msra.mxu0 %v1056
    %1509 = vmatprep.subr.mxu0 %v1051
    %1510 = vmatpush1.msra.mxu0 %v1050
    %1511 = vmatprep.subr.mxu0 %v1045
    %1512 = vmatpush1.msra.mxu0 %v1044
    %1513 = vmatprep.subr.mxu0 %v1039
    %1514 = vmatpush1.msra.mxu0 %v1038
    %1515 = vmatprep.subr.mxu0 %v1033
    %1516 = vmatpush1.msra.mxu0 %v1032
    %1517 = vmatprep.subr.mxu0 %v1027
    %1518 = vmatpush1.msra.mxu0 %v1026
    %1519 = vmatprep.subr.mxu0 %v1021
    %1520 = vmatpush1.msra.mxu0 %v1020
    %1521 = vmatprep.subr.mxu0 %v1015
    %1522 = vmatpush1.msra.mxu0 %v1014
    %1523 = vmatprep.subr.mxu0 0.0
    %1524 = vmatpush2.msra.mxu0 0.0
    %1525 = vmatprep.subr.mxu0 0.0
    %1526 = vmatpush2.msra.mxu0 0.0
    %1527 = vmatprep.subr.mxu0 0.0
    %1528 = vmatpush2.msra.mxu0 0.0
    %1529 = vmatprep.subr.mxu0 0.0
    %1530 = vmatpush2.msra.mxu0 0.0
    %1531 = vmatprep.subr.mxu0 0.0
    %1532 = vmatpush2.msra.mxu0 0.0
    %1533 = vmatprep.subr.mxu0 0.0
    %1534 = vmatpush2.msra.mxu0 0.0
    %1535 = vmatprep.subr.mxu0 0.0
    %1536 = vmatpush2.msra.mxu0 0.0
    %1537 = vmatprep.subr.mxu0 0.0
    %1538 = vmatpush2.msra.mxu0 0.0
    %1539 = vmatprep.subr.mxu0 0.0
    %1540 = vmatpush2.msra.mxu0 0.0
    %1541 = vmatprep.subr.mxu0 0.0
    %1542 = vmatpush2.msra.mxu0 0.0
    %1543 = vmatprep.subr.mxu0 0.0
    %1544 = vmatpush2.msra.mxu0 0.0
    %1545 = vmatprep.subr.mxu0 0.0
    %1546 = vmatpush2.msra.mxu0 0.0
    %1547 = vmatprep.subr.mxu0 0.0
    %1548 = vmatpush2.msra.mxu0 0.0
    %1549 = vmatprep.subr.mxu0 0.0
    %1550 = vmatpush2.msra.mxu0 0.0
    %1551 = vmatprep.subr.mxu0 0.0
    %1552 = vmatpush2.msra.mxu0 0.0
    %1553 = vmatprep.subr.mxu0 0.0
    %1554 = vmatpush2.msra.mxu0 0.0
    %1555 = vmatprep.mubr.f32.mxu0 0.0
    %1556 = vmatmul.mubr.f32.gmra.mxu0 %v814
    %v1557 = vpop.f32.mrf.mxu0
    %v1558 = vadd.f32 %v1481, %v1557
    %v1559 = vpop.f32.mrf.mxu0
    %v1560 = vadd.f32 %v1483, %v1559
    %1561 = vmatprep.mubr.f32.mxu0 0.0
    %1562 = vmatmul.mubr.f32.gmra.mxu0 %v817
    %v1563 = vpop.f32.mrf.mxu0
    %v1564 = vadd.f32 %v1487, %v1563
    %v1565 = vpop.f32.mrf.mxu0
    %v1566 = vadd.f32 %v1489, %v1565
    %1567 = vdwg.mxu0
    %v1568 = vmax.f32 %v1250, 0.0
    %v1569 = vmax.f32 %v1252, 0.0
    %v1570 = vmax.f32 %v1404, 0.0
    %v1571 = vmax.f32 %v1406, 0.0
    %v1572 = vmax.f32 %v1558, 0.0
    %v1573 = vmax.f32 %v1560, 0.0
    %v1574 = vmax.f32 %v1256, 0.0
    %v1575 = vmax.f32 %v1258, 0.0
    %v1576 = vmax.f32 %v1410, 0.0
    %v1577 = vmax.f32 %v1412, 0.0
    %v1578 = vmax.f32 %v1564, 0.0
    %v1579 = vmax.f32 %v1566, 0.0
    %1580 = vst [vmem:[#allocation8] sm:$0xff] %v1568
    %1581 = vst [vmem:[#allocation8 + $0x8] sm:$0xff] %v1569
    %1582 = vst [vmem:[#allocation8 + $0x10] sm:$0xff] %v1570
    %1583 = vst [vmem:[#allocation8 + $0x18] sm:$0xff] %v1571
    %1584 = vst [vmem:[#allocation8 + $0x20] sm:$0xff] %v1572
    %1585 = vst [vmem:[#allocation8 + $0x28] sm:$0xff] %v1573
    %1586 = vst [vmem:[#allocation8 + $0x30] sm:$0xff] %v1574
    %1587 = vst [vmem:[#allocation8 + $0x38] sm:$0xff] %v1575
    %1588 = vst [vmem:[#allocation8 + $0x40] sm:$0xff] %v1576
    %1589 = vst [vmem:[#allocation8 + $0x48] sm:$0xff] %v1577
    %1590 = vst [vmem:[#allocation8 + $0x50] sm:$0xff] %v1578
    %1591 = vst [vmem:[#allocation8 + $0x58] sm:$0xff] %v1579
    // Predicated region
    $region26: #{tpu_custom_call.1} parent=1 // pred_check
      _
    $region27: #{tpu_custom_call.1} parent=1 // pred_check_branch
      %1593 = sbr.rel (0) target = $region29
    $region28: #{tpu_custom_call.1} parent=1 // pred_region
      %s1595 = ssub.s32 1536, 1536
      %1596 = vsyncadd [#allocation4], %s1595
      %s1597 = sshll.u32 [#allocation8], 4
      %s1598 = int_to_ptr.vmem [resolvable:$true] %s1597
      %1603 = dma.vmem_to_hbm [thread:$0]  %s1598, 1536, %s3, [#allocation4], 768, 768, 48
    $region29: #{tpu_custom_call.1} parent=1 // pred_fallthru
      _
    // Predicated region
    $region30: #{tpu_custom_call.1} parent=1 // pred_check
      _
    $region31: #{tpu_custom_call.1} parent=1 // pred_check_branch
      %1605 = sbr.rel (0) target = $region33
    $region32: #{tpu_custom_call.1} parent=1 // pred_region
      %1606 = dma.done [#allocation4], 1536
    $region33: #{tpu_custom_call.1} parent=1 // pred_fallthru
      _
    %1607 = vsyncpa [#allocation3], 1
    %1608 = vsyncpa [#allocation6], 1
    %1609 = vsyncpa [#allocation4], 1

</llo_original>
